<compile_context>
chip_gen: v6e
topology: v6e:2x2x1
jax: 0.10.0
libtpu: 0.0.40
codegen_flags: <defaults>
</compile_context>

<pallas_src>
import math
from functools import partial

import numpy as np
import jax
import jax.numpy as jnp
from jax import lax
from jax.experimental import pallas as pl
from jax.experimental.pallas import tpu as pltpu


def _build_pool_matrix(Bt, S, mem_len):
    """Block-diagonal P such that P @ x_flat == init_mem(x, 'mean') flattened.

    x_flat is the (Bt*S, D) row-flattened chunk; result is (Bt*mem_len, D).
    """
    P = np.zeros((Bt * mem_len, Bt * S), dtype=np.float32)
    if S <= mem_len:
        pad = mem_len - S
        for b in range(Bt):
            for m in range(pad, mem_len):
                P[b * mem_len + m, b * S + (m - pad)] = 1.0
    else:
        stride = S // mem_len
        ksize = S - (mem_len - 1) * stride
        for b in range(Bt):
            for m in range(mem_len):
                s0 = m * stride
                P[b * mem_len + m, b * S + s0: b * S + s0 + ksize] = 1.0 / ksize
    return jnp.asarray(P)


def _build_batch_mask(Bt, Q, mem_len):
    """(Bt*Q, Bt*mem_len) additive mask: 0 within a sample, -1e30 across samples."""
    m = np.full((Bt * Q, Bt * mem_len), -1e30, dtype=np.float32)
    for b in range(Bt):
        m[b * Q:(b + 1) * Q, b * mem_len:(b + 1) * mem_len] = 0.0
    return jnp.asarray(m)


def _make_kernel(num_heads, hidden_dim, scale, use_bf16):
    head_dim = hidden_dim // num_heads

    def mm(a, b):
        if use_bf16:
            a = a.astype(jnp.bfloat16)
            b = b.astype(jnp.bfloat16)
        return jnp.dot(a, b, preferred_element_type=jnp.float32)

    def mm_t(a, b):  # a @ b.T via dot_general (contract last dims)
        if use_bf16:
            a = a.astype(jnp.bfloat16)
            b = b.astype(jnp.bfloat16)
        return lax.dot_general(a, b, (((1,), (1,)), ((), ())),
                               preferred_element_type=jnp.float32)

    def kernel(q_ref, k_ref, v_ref, pool_ref, nmask_ref,
               wkp_ref, bkp_ref, wvp_ref, bvp_ref,
               wq_ref, wk_ref, wv_ref, wo_ref,
               o_ref):
        q = q_ref[...]                       # (Bt*Q, Dq)
        k = k_ref[...]                       # (Bt*S, Dk)
        v = v_ref[...]                       # (Bt*S, Dv)

        # --- proj_k / proj_v (nn.Linear): one flattened matmul each ---
        kp = mm(k, wkp_ref[...]) + bkp_ref[...]          # (Bt*S, mem_dim)
        vp = mm(v, wvp_ref[...]) + bvp_ref[...]

        # --- init_mem('mean'): single matmul with block-diagonal pooling P ---
        mem_k = mm(pool_ref[...], kp)                    # (Bt*M, mem_dim)
        mem_v = mm(pool_ref[...], vp)

        # --- DotAttention head projections (all heads at once) ---
        qh = mm(q, wq_ref[...])                          # (Bt*Q, hidden)
        kh = mm(mem_k, wk_ref[...])                      # (Bt*M, hidden)
        vh = mm(mem_v, wv_ref[...])                      # (Bt*M, hidden)

        neg = nmask_ref[...]                             # cross-sample -inf mask

        # Per-head attention; output projection fused as a per-head
        # accumulation: attn_vec @ Wo == sum_h (p_h @ v_h) @ Wo[h*hd:(h+1)*hd].
        out = jnp.zeros(o_ref.shape, jnp.float32)
        for h in range(num_heads):                       # tiny static unroll
            sl = slice(h * head_dim, (h + 1) * head_dim)
            s = mm_t(qh[:, sl], kh[:, sl]) * scale + neg     # (Bt*Q, Bt*M)
            s = s - jnp.max(s, axis=-1, keepdims=True)
            p = jnp.exp(s)
            p = p * pl.reciprocal(jnp.sum(p, axis=-1, keepdims=True),
                                  approx=True)
            av_h = mm(p, vh[:, sl])                          # (Bt*Q, head_dim)
            out = out + mm(av_h, wo_ref[sl, :])              # (Bt*Q, Dq)

        o_ref[...] = out.astype(o_ref.dtype)

    return kernel


def mem_dot_attention(query, key, value, params, *, mem_len, num_heads, scale,
                      use_bf16_matmul=False, max_batch_tile=8):
    B, Q, Dq = query.shape
    _, S, Dk = key.shape
    _, _, Dv = value.shape
    hidden_dim = params["weight_q"].shape[1]
    assert hidden_dim % num_heads == 0

    # Batch-chunk size: largest divisor of B not exceeding max_batch_tile.
    Bt = 1
    for d in range(1, min(B, max_batch_tile) + 1):
        if B % d == 0:
            Bt = d
    n_chunks = B // Bt

    pool = _build_pool_matrix(Bt, S, mem_len)            # (Bt*M, Bt*S)
    nmask = _build_batch_mask(Bt, Q, mem_len)            # (Bt*Q, Bt*M)

    # Flatten batch into the row (sublane) axis — free contiguous reshapes.
    q2 = query.reshape(B * Q, Dq)
    k2 = key.reshape(B * S, Dk)
    v2 = value.reshape(B * S, Dv)

    kernel = _make_kernel(num_heads, hidden_dim, scale, use_bf16_matmul)

    def whole(arr):
        shp = arr.shape
        return pl.BlockSpec(shp, lambda i: (0,) * len(shp))

    out2 = pl.pallas_call(
        kernel,
        out_shape=jax.ShapeDtypeStruct((B * Q, Dq), query.dtype),
        grid=(n_chunks,),
        in_specs=[
            pl.BlockSpec((Bt * Q, Dq), lambda i: (i, 0)),
            pl.BlockSpec((Bt * S, Dk), lambda i: (i, 0)),
            pl.BlockSpec((Bt * S, Dv), lambda i: (i, 0)),
            whole(pool),
            whole(nmask),
            whole(params["proj_k_w"]), whole(params["proj_k_b"]),
            whole(params["proj_v_w"]), whole(params["proj_v_b"]),
            whole(params["weight_q"]), whole(params["weight_k"]),
            whole(params["weight_v"]), whole(params["weight_o"]),
        ],
        out_specs=pl.BlockSpec((Bt * Q, Dq), lambda i: (i, 0)),
        compiler_params=pltpu.CompilerParams(
            dimension_semantics=("parallel",)),
    )(q2, k2, v2, pool, nmask,
      params["proj_k_w"], params["proj_k_b"],
      params["proj_v_w"], params["proj_v_b"],
      params["weight_q"], params["weight_k"],
      params["weight_v"], params["weight_o"])

    return out2.reshape(B, Q, Dq)


def reference(query, key, value, params, *, mem_len, num_heads, scale):
    """Pure-JAX reference mirroring the PyTorch forward."""
    kp = key @ params["proj_k_w"] + params["proj_k_b"]
    vp = value @ params["proj_v_w"] + params["proj_v_b"]
    B, S, Dm = kp.shape
    if S <= mem_len:
        pad = mem_len - S
        mem_k = jnp.concatenate([jnp.zeros((B, pad, Dm)), kp], axis=1)
        mem_v = jnp.concatenate([jnp.zeros((B, pad, Dm)), vp], axis=1)
    else:
        stride = S // mem_len
        ksize = S - (mem_len - 1) * stride
        sls = [slice(m * stride, m * stride + ksize) for m in range(mem_len)]
        mem_k = jnp.stack([kp[:, sl].mean(axis=1) for sl in sls], axis=1)
        mem_v = jnp.stack([vp[:, sl].mean(axis=1) for sl in sls], axis=1)
    hidden = params["weight_q"].shape[1]
    hd = hidden // num_heads
    Q = query.shape[1]
    q = (query @ params["weight_q"]).reshape(B, Q, num_heads, hd)
    k = (mem_k @ params["weight_k"]).reshape(B, mem_len, num_heads, hd)
    v = (mem_v @ params["weight_v"]).reshape(B, mem_len, num_heads, hd)
    s = jnp.einsum('bind,bjnd->bijn', q, k) * scale
    p = jax.nn.softmax(s, axis=2)
    av = jnp.einsum('bijn,bjnd->bind', p, v).reshape(B, Q, hidden)
    return av @ params["weight_o"]


if __name__ == "__main__":
    # Small shapes consistent with the module's forward.
    B, Q, S = 2, 8, 8
    query_dim = key_dim = value_dim = 32
    mem_dim = 32
    hidden_dim = 32
    num_heads = 2
    mem_len = 4
    scale = 1.0 / math.sqrt(hidden_dim / num_heads)

    key0 = jax.random.PRNGKey(0)
    ks = jax.random.split(key0, 12)
    f32 = jnp.float32

    query = jax.random.normal(ks[0], (B, Q, query_dim), f32)
    key_in = jax.random.normal(ks[1], (B, S, key_dim), f32)
    value_in = jax.random.normal(ks[2], (B, S, value_dim), f32)

    # Deterministic "normal" init for all parameters (nn.Linear weights are
    # stored (out,in) in torch; here pre-transposed to (in,out)).
    params = {
        "proj_k_w": 0.1 * jax.random.normal(ks[3], (key_dim, mem_dim), f32),
        "proj_k_b": 0.1 * jax.random.normal(ks[4], (1, mem_dim), f32),
        "proj_v_w": 0.1 * jax.random.normal(ks[5], (value_dim, mem_dim), f32),
        "proj_v_b": 0.1 * jax.random.normal(ks[6], (1, mem_dim), f32),
        "weight_q": 0.1 * jax.random.normal(ks[7], (query_dim, hidden_dim), f32),
        "weight_k": 0.1 * jax.random.normal(ks[8], (mem_dim, hidden_dim), f32),
        "weight_v": 0.1 * jax.random.normal(ks[9], (mem_dim, hidden_dim), f32),
        "weight_o": 0.1 * jax.random.normal(ks[10], (hidden_dim, query_dim), f32),
    }

    run = partial(mem_dot_attention, mem_len=mem_len, num_heads=num_heads,
                  scale=scale)
    out = jax.block_until_ready(run(query, key_in, value_in, params))

    ref = reference(query, key_in, value_in, params,
                    mem_len=mem_len, num_heads=num_heads, scale=scale)
    assert out.shape == (B, Q, query_dim)
    # Tolerance accounts for pl.reciprocal(approx=True) in the softmax denom
    # (~1e-4 relative); everything else is exact f32 math.
    assert jnp.allclose(out, ref, rtol=1e-3, atol=1e-3), "mismatch vs reference"

    # TODO(synk): mask-driven per-sample init_memory (batch_convert_mask_to_start_and_end)
    # and the 'attn'/'lstm'/'circular' mem_init variants are data-dependent loops
    # not implemented here; dropout is identity at inference.
    print("KERNEL_OK")
</pallas_src>

<mosaic_0001>
module attributes {stable_mosaic.version = 11 : i64} {
  func.func @kernel(%arg0: i32, %arg1: memref<16x32xf32, #tpu.memory_space<vmem>>, %arg2: memref<16x32xf32, #tpu.memory_space<vmem>>, %arg3: memref<16x32xf32, #tpu.memory_space<vmem>>, %arg4: memref<8x16xf32, #tpu.memory_space<vmem>>, %arg5: memref<16x8xf32, #tpu.memory_space<vmem>>, %arg6: memref<32x32xf32, #tpu.memory_space<vmem>>, %arg7: memref<1x32xf32, #tpu.memory_space<vmem>>, %arg8: memref<32x32xf32, #tpu.memory_space<vmem>>, %arg9: memref<1x32xf32, #tpu.memory_space<vmem>>, %arg10: memref<32x32xf32, #tpu.memory_space<vmem>>, %arg11: memref<32x32xf32, #tpu.memory_space<vmem>>, %arg12: memref<32x32xf32, #tpu.memory_space<vmem>>, %arg13: memref<32x32xf32, #tpu.memory_space<vmem>>, %arg14: memref<16x32xf32, #tpu.memory_space<vmem>>) attributes {dimension_semantics = [#tpu.dimension_semantics<parallel>], iteration_bounds = array<i64: 1>, scalar_prefetch = 0 : i64, scratch_operands = 0 : i64, tpu.core_type = #tpu.core_type<tc>, window_params = [{transform_indices = @transform_0, window_bounds = array<i64: 16, 32>}, {transform_indices = @transform_1, window_bounds = array<i64: 16, 32>}, {transform_indices = @transform_2, window_bounds = array<i64: 16, 32>}, {pipeline_mode = #tpu.pipeline_mode<synchronous>, transform_indices = @transform_3, window_bounds = array<i64: 8, 16>}, {pipeline_mode = #tpu.pipeline_mode<synchronous>, transform_indices = @transform_4, window_bounds = array<i64: 16, 8>}, {pipeline_mode = #tpu.pipeline_mode<synchronous>, transform_indices = @transform_5, window_bounds = array<i64: 32, 32>}, {pipeline_mode = #tpu.pipeline_mode<synchronous>, transform_indices = @transform_6, window_bounds = array<i64: 1, 32>}, {pipeline_mode = #tpu.pipeline_mode<synchronous>, transform_indices = @transform_7, window_bounds = array<i64: 32, 32>}, {pipeline_mode = #tpu.pipeline_mode<synchronous>, transform_indices = @transform_8, window_bounds = array<i64: 1, 32>}, {pipeline_mode = #tpu.pipeline_mode<synchronous>, transform_indices = @transform_9, window_bounds = array<i64: 32, 32>}, {pipeline_mode = #tpu.pipeline_mode<synchronous>, transform_indices = @transform_10, window_bounds = array<i64: 32, 32>}, {pipeline_mode = #tpu.pipeline_mode<synchronous>, transform_indices = @transform_11, window_bounds = array<i64: 32, 32>}, {pipeline_mode = #tpu.pipeline_mode<synchronous>, transform_indices = @transform_12, window_bounds = array<i64: 32, 32>}, {transform_indices = @transform_13, window_bounds = array<i64: 16, 32>}]} {
    %c0 = arith.constant 0 : index
    %c0_0 = arith.constant 0 : index
    %0 = vector.load %arg1[%c0, %c0_0] : memref<16x32xf32, #tpu.memory_space<vmem>>, vector<16x32xf32>
    %c0_1 = arith.constant 0 : index
    %c0_2 = arith.constant 0 : index
    %1 = vector.load %arg2[%c0_1, %c0_2] : memref<16x32xf32, #tpu.memory_space<vmem>>, vector<16x32xf32>
    %c0_3 = arith.constant 0 : index
    %c0_4 = arith.constant 0 : index
    %2 = vector.load %arg3[%c0_3, %c0_4] : memref<16x32xf32, #tpu.memory_space<vmem>>, vector<16x32xf32>
    %c0_5 = arith.constant 0 : index
    %c0_6 = arith.constant 0 : index
    %3 = vector.load %arg6[%c0_5, %c0_6] : memref<32x32xf32, #tpu.memory_space<vmem>>, vector<32x32xf32>
    %cst = arith.constant dense<0.000000e+00> : vector<16x32xf32>
    %4 = tpu.matmul %1, %3, %cst {dimension_numbers = #tpu.dot_dimension_numbers<[1], [0], [0], [1], [0, 0, 1, 1], [], []>} : vector<16x32xf32>, vector<32x32xf32>, vector<16x32xf32> -> vector<16x32xf32>
    %c0_7 = arith.constant 0 : index
    %c0_8 = arith.constant 0 : index
    %5 = vector.load %arg7[%c0_7, %c0_8] : memref<1x32xf32, #tpu.memory_space<vmem>>, vector<1x32xf32>
    %6 = vector.broadcast %5 : vector<1x32xf32> to vector<16x32xf32>
    %7 = arith.addf %4, %6 : vector<16x32xf32>
    %c0_9 = arith.constant 0 : index
    %c0_10 = arith.constant 0 : index
    %8 = vector.load %arg8[%c0_9, %c0_10] : memref<32x32xf32, #tpu.memory_space<vmem>>, vector<32x32xf32>
    %cst_11 = arith.constant dense<0.000000e+00> : vector<16x32xf32>
    %9 = tpu.matmul %2, %8, %cst_11 {dimension_numbers = #tpu.dot_dimension_numbers<[1], [0], [0], [1], [0, 0, 1, 1], [], []>} : vector<16x32xf32>, vector<32x32xf32>, vector<16x32xf32> -> vector<16x32xf32>
    %c0_12 = arith.constant 0 : index
    %c0_13 = arith.constant 0 : index
    %10 = vector.load %arg9[%c0_12, %c0_13] : memref<1x32xf32, #tpu.memory_space<vmem>>, vector<1x32xf32>
    %11 = vector.broadcast %10 : vector<1x32xf32> to vector<16x32xf32>
    %12 = arith.addf %9, %11 : vector<16x32xf32>
    %c0_14 = arith.constant 0 : index
    %c0_15 = arith.constant 0 : index
    %13 = vector.load %arg4[%c0_14, %c0_15] : memref<8x16xf32, #tpu.memory_space<vmem>>, vector<8x16xf32>
    %cst_16 = arith.constant dense<0.000000e+00> : vector<8x32xf32>
    %14 = tpu.matmul %13, %7, %cst_16 {dimension_numbers = #tpu.dot_dimension_numbers<[1], [0], [0], [1], [0, 0, 1, 1], [], []>} : vector<8x16xf32>, vector<16x32xf32>, vector<8x32xf32> -> vector<8x32xf32>
    %c0_17 = arith.constant 0 : index
    %c0_18 = arith.constant 0 : index
    %15 = vector.load %arg4[%c0_17, %c0_18] : memref<8x16xf32, #tpu.memory_space<vmem>>, vector<8x16xf32>
    %cst_19 = arith.constant dense<0.000000e+00> : vector<8x32xf32>
    %16 = tpu.matmul %15, %12, %cst_19 {dimension_numbers = #tpu.dot_dimension_numbers<[1], [0], [0], [1], [0, 0, 1, 1], [], []>} : vector<8x16xf32>, vector<16x32xf32>, vector<8x32xf32> -> vector<8x32xf32>
    %c0_20 = arith.constant 0 : index
    %c0_21 = arith.constant 0 : index
    %17 = vector.load %arg10[%c0_20, %c0_21] : memref<32x32xf32, #tpu.memory_space<vmem>>, vector<32x32xf32>
    %cst_22 = arith.constant dense<0.000000e+00> : vector<16x32xf32>
    %18 = tpu.matmul %0, %17, %cst_22 {dimension_numbers = #tpu.dot_dimension_numbers<[1], [0], [0], [1], [0, 0, 1, 1], [], []>} : vector<16x32xf32>, vector<32x32xf32>, vector<16x32xf32> -> vector<16x32xf32>
    %c0_23 = arith.constant 0 : index
    %c0_24 = arith.constant 0 : index
    %19 = vector.load %arg11[%c0_23, %c0_24] : memref<32x32xf32, #tpu.memory_space<vmem>>, vector<32x32xf32>
    %cst_25 = arith.constant dense<0.000000e+00> : vector<8x32xf32>
    %20 = tpu.matmul %14, %19, %cst_25 {dimension_numbers = #tpu.dot_dimension_numbers<[1], [0], [0], [1], [0, 0, 1, 1], [], []>} : vector<8x32xf32>, vector<32x32xf32>, vector<8x32xf32> -> vector<8x32xf32>
    %c0_26 = arith.constant 0 : index
    %c0_27 = arith.constant 0 : index
    %21 = vector.load %arg12[%c0_26, %c0_27] : memref<32x32xf32, #tpu.memory_space<vmem>>, vector<32x32xf32>
    %cst_28 = arith.constant dense<0.000000e+00> : vector<8x32xf32>
    %22 = tpu.matmul %16, %21, %cst_28 {dimension_numbers = #tpu.dot_dimension_numbers<[1], [0], [0], [1], [0, 0, 1, 1], [], []>} : vector<8x32xf32>, vector<32x32xf32>, vector<8x32xf32> -> vector<8x32xf32>
    %c0_29 = arith.constant 0 : index
    %c0_30 = arith.constant 0 : index
    %23 = vector.load %arg5[%c0_29, %c0_30] : memref<16x8xf32, #tpu.memory_space<vmem>>, vector<16x8xf32>
    %cst_31 = arith.constant 0.000000e+00 : f32
    %24 = vector.broadcast %cst_31 : f32 to vector<16x32xf32>
    %25 = vector.extract_strided_slice %18 {offsets = [0, 0], sizes = [16, 16], strides = [1, 1]} : vector<16x32xf32> to vector<16x16xf32>
    %26 = vector.extract_strided_slice %20 {offsets = [0, 0], sizes = [8, 16], strides = [1, 1]} : vector<8x32xf32> to vector<8x16xf32>
    %cst_32 = arith.constant dense<0.000000e+00> : vector<16x8xf32>
    %27 = tpu.matmul %25, %26, %cst_32 {dimension_numbers = #tpu.dot_dimension_numbers<[1], [1], [0], [0], [0, 0, 1, 0], [], []>} : vector<16x16xf32>, vector<8x16xf32>, vector<16x8xf32> -> vector<16x8xf32>
    %cst_33 = arith.constant 2.500000e-01 : f32
    %28 = vector.broadcast %cst_33 : f32 to vector<16x8xf32>
    %29 = arith.mulf %27, %28 : vector<16x8xf32>
    %30 = arith.addf %29, %23 : vector<16x8xf32>
    %cst_34 = arith.constant dense<0xFF800000> : vector<16xf32>
    %31 = vector.multi_reduction <maximumf>, %30, %cst_34 [1] : vector<16x8xf32> to vector<16xf32>
    %32 = vector.shape_cast %31 : vector<16xf32> to vector<16x1xf32>
    %33 = vector.broadcast %32 : vector<16x1xf32> to vector<16x8xf32>
    %34 = arith.subf %30, %33 : vector<16x8xf32>
    %35 = math.exp %34 : vector<16x8xf32>
    %cst_35 = arith.constant dense<0.000000e+00> : vector<16xf32>
    %36 = vector.multi_reduction <add>, %35, %cst_35 [1] : vector<16x8xf32> to vector<16xf32>
    %37 = vector.shape_cast %36 : vector<16xf32> to vector<16x1xf32>
    %38 = tpu.reciprocal %37 {approx = true} : vector<16x1xf32> -> vector<16x1xf32>
    %39 = vector.broadcast %38 : vector<16x1xf32> to vector<16x8xf32>
    %40 = arith.mulf %35, %39 : vector<16x8xf32>
    %41 = vector.extract_strided_slice %22 {offsets = [0, 0], sizes = [8, 16], strides = [1, 1]} : vector<8x32xf32> to vector<8x16xf32>
    %cst_36 = arith.constant dense<0.000000e+00> : vector<16x16xf32>
    %42 = tpu.matmul %40, %41, %cst_36 {dimension_numbers = #tpu.dot_dimension_numbers<[1], [0], [0], [1], [0, 0, 1, 1], [], []>} : vector<16x8xf32>, vector<8x16xf32>, vector<16x16xf32> -> vector<16x16xf32>
    %c0_37 = arith.constant 0 : index
    %c0_38 = arith.constant 0 : index
    %43 = vector.load %arg13[%c0_37, %c0_38] : memref<32x32xf32, #tpu.memory_space<vmem>>, vector<16x32xf32>
    %cst_39 = arith.constant dense<0.000000e+00> : vector<16x32xf32>
    %44 = tpu.matmul %42, %43, %cst_39 {dimension_numbers = #tpu.dot_dimension_numbers<[1], [0], [0], [1], [0, 0, 1, 1], [], []>} : vector<16x16xf32>, vector<16x32xf32>, vector<16x32xf32> -> vector<16x32xf32>
    %45 = arith.addf %24, %44 : vector<16x32xf32>
    %46 = vector.extract_strided_slice %18 {offsets = [0, 16], sizes = [16, 16], strides = [1, 1]} : vector<16x32xf32> to vector<16x16xf32>
    %47 = vector.extract_strided_slice %20 {offsets = [0, 16], sizes = [8, 16], strides = [1, 1]} : vector<8x32xf32> to vector<8x16xf32>
    %cst_40 = arith.constant dense<0.000000e+00> : vector<16x8xf32>
    %48 = tpu.matmul %46, %47, %cst_40 {dimension_numbers = #tpu.dot_dimension_numbers<[1], [1], [0], [0], [0, 0, 1, 0], [], []>} : vector<16x16xf32>, vector<8x16xf32>, vector<16x8xf32> -> vector<16x8xf32>
    %cst_41 = arith.constant 2.500000e-01 : f32
    %49 = vector.broadcast %cst_41 : f32 to vector<16x8xf32>
    %50 = arith.mulf %48, %49 : vector<16x8xf32>
    %51 = arith.addf %50, %23 : vector<16x8xf32>
    %cst_42 = arith.constant dense<0xFF800000> : vector<16xf32>
    %52 = vector.multi_reduction <maximumf>, %51, %cst_42 [1] : vector<16x8xf32> to vector<16xf32>
    %53 = vector.shape_cast %52 : vector<16xf32> to vector<16x1xf32>
    %54 = vector.broadcast %53 : vector<16x1xf32> to vector<16x8xf32>
    %55 = arith.subf %51, %54 : vector<16x8xf32>
    %56 = math.exp %55 : vector<16x8xf32>
    %cst_43 = arith.constant dense<0.000000e+00> : vector<16xf32>
    %57 = vector.multi_reduction <add>, %56, %cst_43 [1] : vector<16x8xf32> to vector<16xf32>
    %58 = vector.shape_cast %57 : vector<16xf32> to vector<16x1xf32>
    %59 = tpu.reciprocal %58 {approx = true} : vector<16x1xf32> -> vector<16x1xf32>
    %60 = vector.broadcast %59 : vector<16x1xf32> to vector<16x8xf32>
    %61 = arith.mulf %56, %60 : vector<16x8xf32>
    %62 = vector.extract_strided_slice %22 {offsets = [0, 16], sizes = [8, 16], strides = [1, 1]} : vector<8x32xf32> to vector<8x16xf32>
    %cst_44 = arith.constant dense<0.000000e+00> : vector<16x16xf32>
    %63 = tpu.matmul %61, %62, %cst_44 {dimension_numbers = #tpu.dot_dimension_numbers<[1], [0], [0], [1], [0, 0, 1, 1], [], []>} : vector<16x8xf32>, vector<8x16xf32>, vector<16x16xf32> -> vector<16x16xf32>
    %c16 = arith.constant 16 : index
    %c0_45 = arith.constant 0 : index
    %64 = vector.load %arg13[%c16, %c0_45] : memref<32x32xf32, #tpu.memory_space<vmem>>, vector<16x32xf32>
    %cst_46 = arith.constant dense<0.000000e+00> : vector<16x32xf32>
    %65 = tpu.matmul %63, %64, %cst_46 {dimension_numbers = #tpu.dot_dimension_numbers<[1], [0], [0], [1], [0, 0, 1, 1], [], []>} : vector<16x16xf32>, vector<16x32xf32>, vector<16x32xf32> -> vector<16x32xf32>
    %66 = arith.addf %45, %65 : vector<16x32xf32>
    %c0_47 = arith.constant 0 : index
    %c0_48 = arith.constant 0 : index
    %67 = vector.load %arg14[%c0_47, %c0_48] : memref<16x32xf32, #tpu.memory_space<vmem>>, vector<16x32xf32>
    tpu.vector_store %arg14[%c0_47, %c0_48], %66 {strides = array<i32>} : memref<16x32xf32, #tpu.memory_space<vmem>>, vector<16x32xf32>,
    return
  }
  func.func @transform_0(%arg0: i32) -> (i32, i32) {
    %c0_i32 = arith.constant 0 : i32
    %c0_i32_0 = arith.constant 0 : i32
    return %arg0, %c0_i32 : i32, i32
  }
  func.func @transform_1(%arg0: i32) -> (i32, i32) {
    %c0_i32 = arith.constant 0 : i32
    %c0_i32_0 = arith.constant 0 : i32
    return %arg0, %c0_i32 : i32, i32
  }
  func.func @transform_2(%arg0: i32) -> (i32, i32) {
    %c0_i32 = arith.constant 0 : i32
    %c0_i32_0 = arith.constant 0 : i32
    return %arg0, %c0_i32 : i32, i32
  }
  func.func @transform_3(%arg0: i32) -> (i32, i32) {
    %c0_i32 = arith.constant 0 : i32
    %c0_i32_0 = arith.constant 0 : i32
    %c0_i32_1 = arith.constant 0 : i32
    return %c0_i32, %c0_i32_0 : i32, i32
  }
  func.func @transform_4(%arg0: i32) -> (i32, i32) {
    %c0_i32 = arith.constant 0 : i32
    %c0_i32_0 = arith.constant 0 : i32
    %c0_i32_1 = arith.constant 0 : i32
    return %c0_i32, %c0_i32_0 : i32, i32
  }
  func.func @transform_5(%arg0: i32) -> (i32, i32) {
    %c0_i32 = arith.constant 0 : i32
    %c0_i32_0 = arith.constant 0 : i32
    %c0_i32_1 = arith.constant 0 : i32
    return %c0_i32, %c0_i32_0 : i32, i32
  }
  func.func @transform_6(%arg0: i32) -> (i32, i32) {
    %c0_i32 = arith.constant 0 : i32
    %c0_i32_0 = arith.constant 0 : i32
    %c0_i32_1 = arith.constant 0 : i32
    return %c0_i32, %c0_i32_0 : i32, i32
  }
  func.func @transform_7(%arg0: i32) -> (i32, i32) {
    %c0_i32 = arith.constant 0 : i32
    %c0_i32_0 = arith.constant 0 : i32
    %c0_i32_1 = arith.constant 0 : i32
    return %c0_i32, %c0_i32_0 : i32, i32
  }
  func.func @transform_8(%arg0: i32) -> (i32, i32) {
    %c0_i32 = arith.constant 0 : i32
    %c0_i32_0 = arith.constant 0 : i32
    %c0_i32_1 = arith.constant 0 : i32
    return %c0_i32, %c0_i32_0 : i32, i32
  }
  func.func @transform_9(%arg0: i32) -> (i32, i32) {
    %c0_i32 = arith.constant 0 : i32
    %c0_i32_0 = arith.constant 0 : i32
    %c0_i32_1 = arith.constant 0 : i32
    return %c0_i32, %c0_i32_0 : i32, i32
  }
  func.func @transform_10(%arg0: i32) -> (i32, i32) {
    %c0_i32 = arith.constant 0 : i32
    %c0_i32_0 = arith.constant 0 : i32
    %c0_i32_1 = arith.constant 0 : i32
    return %c0_i32, %c0_i32_0 : i32, i32
  }
  func.func @transform_11(%arg0: i32) -> (i32, i32) {
    %c0_i32 = arith.constant 0 : i32
    %c0_i32_0 = arith.constant 0 : i32
    %c0_i32_1 = arith.constant 0 : i32
    return %c0_i32, %c0_i32_0 : i32, i32
  }
  func.func @transform_12(%arg0: i32) -> (i32, i32) {
    %c0_i32 = arith.constant 0 : i32
    %c0_i32_0 = arith.constant 0 : i32
    %c0_i32_1 = arith.constant 0 : i32
    return %c0_i32, %c0_i32_0 : i32, i32
  }
  func.func @transform_13(%arg0: i32) -> (i32, i32) {
    %c0_i32 = arith.constant 0 : i32
    %c0_i32_0 = arith.constant 0 : i32
    return %arg0, %c0_i32 : i32, i32
  }
}

</mosaic_0001>

<llo_original>
// kernel: tpu_custom_call.1
$region0: #{tpu_custom_call.1}
  #allocation0 [shape = 'u32[]', space=smem, size = 0x4, offset = 0x4, fixed_abs, tag = 'smem constant byte address 0x4 - core index']
  #allocation1 [shape = 'u32[144,128]{1,0:T(1,128)}', space=vmem, size = 0x12000, scoped, tag = 'internal scratch']
  %s0 = inlined_call_operand.hbm [shape: f32[16,32], index: 0, kind: input, shape index: {}]
  %s1 = inlined_call_operand.hbm [shape: f32[16,32], index: 1, kind: input, shape index: {}]
  %s2 = inlined_call_operand.hbm [shape: f32[16,32], index: 2, kind: input, shape index: {}]
  %s3 = inlined_call_operand.hbm [shape: f32[8,16], index: 3, kind: input, shape index: {}]
  %s4 = inlined_call_operand.vmem [shape: f32[16,8], index: 4, kind: input, shape index: {}]
  %s5 = inlined_call_operand.vmem [shape: f32[32,32], index: 5, kind: input, shape index: {}]
  %s6 = inlined_call_operand.vmem [shape: f32[1,32], index: 6, kind: input, shape index: {}]
  %s7 = inlined_call_operand.hbm [shape: f32[32,32], index: 7, kind: input, shape index: {}]
  %s8 = inlined_call_operand.vmem [shape: f32[1,32], index: 8, kind: input, shape index: {}]
  %s9 = inlined_call_operand.hbm [shape: f32[32,32], index: 9, kind: input, shape index: {}]
  %s10 = inlined_call_operand.hbm [shape: f32[32,32], index: 10, kind: input, shape index: {}]
  %s11 = inlined_call_operand.hbm [shape: f32[32,32], index: 11, kind: input, shape index: {}]
  %s12 = inlined_call_operand.hbm [shape: f32[32,32], index: 12, kind: input, shape index: {}]
  %s13 = inlined_call_operand.hbm [shape: f32[16,32], index: 13, kind: output, shape index: {}]
  %s14 = sld [smem:[#allocation0]]
  $region98: #{tpu_custom_call.1} parent=0
    _
  %s16 = ssub.s32 1, %s14
  %s17 = scalar_select 0, %s16, %s14
  $region1: #{tpu_custom_call.1} parent=0
    #allocation2 [shape = 'u8[8192]{0}', space=vmem, size = 0x2000, scoped, tag = 'input window, operand 0, single buffered']
    #allocation3 [shape = 's32[1]{0}', space=sflag, size = 0x4, scoped, tag = 'scoped memory for tpu_custom_call.1']
    #allocation4 [shape = 's32[1]{0}', space=sflag, size = 0x4, scoped, tag = 'scoped memory for tpu_custom_call.1']
    #allocation5 [shape = 'u8[8192]{0}', space=vmem, size = 0x2000, scoped, tag = 'input window, operand 1, single buffered']
    #allocation6 [shape = 's32[1]{0}', space=sflag, size = 0x4, scoped, tag = 'scoped memory for tpu_custom_call.1']
    #allocation7 [shape = 'u8[8192]{0}', space=vmem, size = 0x2000, scoped, tag = 'input window, operand 2, single buffered']
    #allocation8 [shape = 'u8[4096]{0}', space=vmem, size = 0x1000, scoped, tag = 'input window, operand 3, single buffered']
    #allocation9 [shape = 's32[1]{0}', space=sflag, size = 0x4, scoped, tag = 'scoped memory for tpu_custom_call.1']
    #allocation10 [shape = 'u8[16384]{0}', space=vmem, size = 0x4000, scoped, tag = 'input window, operand 7, single buffered']
    #allocation11 [shape = 'u8[16384]{0}', space=vmem, size = 0x4000, scoped, tag = 'input window, operand 9, single buffered']
    #allocation12 [shape = 's32[1]{0}', space=sflag, size = 0x4, scoped, tag = 'scoped memory for tpu_custom_call.1']
    #allocation13 [shape = 'u8[16384]{0}', space=vmem, size = 0x4000, scoped, tag = 'input window, operand 10, single buffered']
    #allocation14 [shape = 'u8[16384]{0}', space=vmem, size = 0x4000, scoped, tag = 'input window, operand 11, single buffered']
    #allocation15 [shape = 's32[1]{0}', space=sflag, size = 0x4, scoped, tag = 'scoped memory for tpu_custom_call.1']
    #allocation16 [shape = 'u8[16384]{0}', space=vmem, size = 0x4000, scoped, tag = 'input window, operand 12, single buffered']
    #allocation17 [shape = 'u8[8192]{0}', space=vmem, size = 0x2000, scoped, tag = 'output window, operand 0, single buffered']
    %18 = vsyncpa [#allocation3], 0
    %19 = vsyncpa [#allocation6], 0
    %20 = vsyncpa [#allocation9], 0
    %21 = vsyncpa [#allocation12], 0
    %22 = vsyncpa [#allocation15], 0
    %23 = vsyncpa [#allocation4], 0
    // Predicated region
    $region2: #{tpu_custom_call.1} parent=1 // pred_check
      _
    $region3: #{tpu_custom_call.1} parent=1 // pred_check_branch
      %25 = sbr.rel (0) target = $region5
    $region4: #{tpu_custom_call.1} parent=1 // pred_region
      %s27 = ssub.s32 256, 256
      %28 = vsyncadd [#allocation3], %s27
      %s29 = sshll.u32 [#allocation2], 4
      %s30 = int_to_ptr.vmem [resolvable:$true] %s29
      %35 = dma.hbm_to_vmem [thread:$0]  %s0, 256, %s30, [#allocation3], 128, 128, 8
    $region5: #{tpu_custom_call.1} parent=1 // pred_fallthru
      _
    // Predicated region
    $region6: #{tpu_custom_call.1} parent=1 // pred_check
      _
    $region7: #{tpu_custom_call.1} parent=1 // pred_check_branch
      %37 = sbr.rel (0) target = $region9
    $region8: #{tpu_custom_call.1} parent=1 // pred_region
      %s39 = ssub.s32 256, 256
      %40 = vsyncadd [#allocation6], %s39
      %s41 = sshll.u32 [#allocation5], 4
      %s42 = int_to_ptr.vmem [resolvable:$true] %s41
      %47 = dma.hbm_to_vmem [thread:$0]  %s1, 256, %s42, [#allocation6], 128, 128, 8
    $region9: #{tpu_custom_call.1} parent=1 // pred_fallthru
      _
    // Predicated region
    $region10: #{tpu_custom_call.1} parent=1 // pred_check
      _
    $region11: #{tpu_custom_call.1} parent=1 // pred_check_branch
      %49 = sbr.rel (0) target = $region13
    $region12: #{tpu_custom_call.1} parent=1 // pred_region
      %s51 = ssub.s32 256, 256
      %52 = vsyncadd [#allocation6], %s51
      %s53 = sshll.u32 [#allocation7], 4
      %s54 = int_to_ptr.vmem [resolvable:$true] %s53
      %59 = dma.hbm_to_vmem [thread:$0]  %s2, 256, %s54, [#allocation6], 128, 128, 8
    $region13: #{tpu_custom_call.1} parent=1 // pred_fallthru
      _
    // Predicated region
    $region14: #{tpu_custom_call.1} parent=1 // pred_check
      _
    $region15: #{tpu_custom_call.1} parent=1 // pred_check_branch
      %61 = sbr.rel (0) target = $region17
    $region16: #{tpu_custom_call.1} parent=1 // pred_region
      %s63 = ssub.s32 128, 128
      %64 = vsyncadd [#allocation9], %s63
      %s66 = sshll.u32 [#allocation8], 4
      %s67 = int_to_ptr.vmem [resolvable:$true] %s66
      %69 = dma.hbm_to_vmem [thread:$0]  %s3, 128, %s67, [#allocation9]
    $region17: #{tpu_custom_call.1} parent=1 // pred_fallthru
      _
    // Predicated region
    $region18: #{tpu_custom_call.1} parent=1 // pred_check
      _
    $region19: #{tpu_custom_call.1} parent=1 // pred_check_branch
      %71 = sbr.rel (0) target = $region21
    $region20: #{tpu_custom_call.1} parent=1 // pred_region
      _
    $region21: #{tpu_custom_call.1} parent=1 // pred_fallthru
      _
    // Predicated region
    $region22: #{tpu_custom_call.1} parent=1 // pred_check
      _
    $region23: #{tpu_custom_call.1} parent=1 // pred_check_branch
      %73 = sbr.rel (0) target = $region25
    $region24: #{tpu_custom_call.1} parent=1 // pred_region
      _
    $region25: #{tpu_custom_call.1} parent=1 // pred_fallthru
      _
    // Predicated region
    $region26: #{tpu_custom_call.1} parent=1 // pred_check
      _
    $region27: #{tpu_custom_call.1} parent=1 // pred_check_branch
      %75 = sbr.rel (0) target = $region29
    $region28: #{tpu_custom_call.1} parent=1 // pred_region
      _
    $region29: #{tpu_custom_call.1} parent=1 // pred_fallthru
      _
    // Predicated region
    $region30: #{tpu_custom_call.1} parent=1 // pred_check
      _
    $region31: #{tpu_custom_call.1} parent=1 // pred_check_branch
      %77 = sbr.rel (0) target = $region33
    $region32: #{tpu_custom_call.1} parent=1 // pred_region
      %s79 = ssub.s32 512, 512
      %80 = vsyncadd [#allocation9], %s79
      %s81 = sshll.u32 [#allocation10], 4
      %s82 = int_to_ptr.vmem [resolvable:$true] %s81
      %87 = dma.hbm_to_vmem [thread:$0]  %s7, 512, %s82, [#allocation9], 128, 128, 8
    $region33: #{tpu_custom_call.1} parent=1 // pred_fallthru
      _
    // Predicated region
    $region34: #{tpu_custom_call.1} parent=1 // pred_check
      _
    $region35: #{tpu_custom_call.1} parent=1 // pred_check_branch
      %89 = sbr.rel (0) target = $region37
    $region36: #{tpu_custom_call.1} parent=1 // pred_region
      _
    $region37: #{tpu_custom_call.1} parent=1 // pred_fallthru
      _
    // Predicated region
    $region38: #{tpu_custom_call.1} parent=1 // pred_check
      _
    $region39: #{tpu_custom_call.1} parent=1 // pred_check_branch
      %91 = sbr.rel (0) target = $region41
    $region40: #{tpu_custom_call.1} parent=1 // pred_region
      %s93 = ssub.s32 512, 512
      %94 = vsyncadd [#allocation12], %s93
      %s95 = sshll.u32 [#allocation11], 4
      %s96 = int_to_ptr.vmem [resolvable:$true] %s95
      %101 = dma.hbm_to_vmem [thread:$0]  %s9, 512, %s96, [#allocation12], 128, 128, 8
    $region41: #{tpu_custom_call.1} parent=1 // pred_fallthru
      _
    // Predicated region
    $region42: #{tpu_custom_call.1} parent=1 // pred_check
      _
    $region43: #{tpu_custom_call.1} parent=1 // pred_check_branch
      %103 = sbr.rel (0) target = $region45
    $region44: #{tpu_custom_call.1} parent=1 // pred_region
      %s105 = ssub.s32 512, 512
      %106 = vsyncadd [#allocation12], %s105
      %s107 = sshll.u32 [#allocation13], 4
      %s108 = int_to_ptr.vmem [resolvable:$true] %s107
      %113 = dma.hbm_to_vmem [thread:$0]  %s10, 512, %s108, [#allocation12], 128, 128, 8
    $region45: #{tpu_custom_call.1} parent=1 // pred_fallthru
      _
    // Predicated region
    $region46: #{tpu_custom_call.1} parent=1 // pred_check
      _
    $region47: #{tpu_custom_call.1} parent=1 // pred_check_branch
      %115 = sbr.rel (0) target = $region49
    $region48: #{tpu_custom_call.1} parent=1 // pred_region
      %s117 = ssub.s32 512, 512
      %118 = vsyncadd [#allocation15], %s117
      %s119 = sshll.u32 [#allocation14], 4
      %s120 = int_to_ptr.vmem [resolvable:$true] %s119
      %125 = dma.hbm_to_vmem [thread:$0]  %s11, 512, %s120, [#allocation15], 128, 128, 8
    $region49: #{tpu_custom_call.1} parent=1 // pred_fallthru
      _
    // Predicated region
    $region50: #{tpu_custom_call.1} parent=1 // pred_check
      _
    $region51: #{tpu_custom_call.1} parent=1 // pred_check_branch
      %127 = sbr.rel (0) target = $region53
    $region52: #{tpu_custom_call.1} parent=1 // pred_region
      %s129 = ssub.s32 512, 512
      %130 = vsyncadd [#allocation15], %s129
      %s131 = sshll.u32 [#allocation16], 4
      %s132 = int_to_ptr.vmem [resolvable:$true] %s131
      %137 = dma.hbm_to_vmem [thread:$0]  %s12, 512, %s132, [#allocation15], 128, 128, 8
    $region53: #{tpu_custom_call.1} parent=1 // pred_fallthru
      _
    // Predicated region
    $region54: #{tpu_custom_call.1} parent=1 // pred_check
      _
    $region55: #{tpu_custom_call.1} parent=1 // pred_check_branch
      %139 = sbr.rel (0) target = $region57
    $region56: #{tpu_custom_call.1} parent=1 // pred_region
      %140 = dma.done [#allocation3], 256
    $region57: #{tpu_custom_call.1} parent=1 // pred_fallthru
      _
    // Predicated region
    $region58: #{tpu_custom_call.1} parent=1 // pred_check
      _
    $region59: #{tpu_custom_call.1} parent=1 // pred_check_branch
      %142 = sbr.rel (0) target = $region61
    $region60: #{tpu_custom_call.1} parent=1 // pred_region
      %143 = dma.done [#allocation6], 256
    $region61: #{tpu_custom_call.1} parent=1 // pred_fallthru
      _
    // Predicated region
    $region62: #{tpu_custom_call.1} parent=1 // pred_check
      _
    $region63: #{tpu_custom_call.1} parent=1 // pred_check_branch
      %145 = sbr.rel (0) target = $region65
    $region64: #{tpu_custom_call.1} parent=1 // pred_region
      %146 = dma.done [#allocation6], 256
    $region65: #{tpu_custom_call.1} parent=1 // pred_fallthru
      _
    // Predicated region
    $region66: #{tpu_custom_call.1} parent=1 // pred_check
      _
    $region67: #{tpu_custom_call.1} parent=1 // pred_check_branch
      %148 = sbr.rel (0) target = $region69
    $region68: #{tpu_custom_call.1} parent=1 // pred_region
      %149 = dma.done [#allocation9], 128
    $region69: #{tpu_custom_call.1} parent=1 // pred_fallthru
      _
    // Predicated region
    $region70: #{tpu_custom_call.1} parent=1 // pred_check
      _
    $region71: #{tpu_custom_call.1} parent=1 // pred_check_branch
      %151 = sbr.rel (0) target = $region73
    $region72: #{tpu_custom_call.1} parent=1 // pred_region
      %152 = dma.done [#allocation9], 512
    $region73: #{tpu_custom_call.1} parent=1 // pred_fallthru
      _
    // Predicated region
    $region74: #{tpu_custom_call.1} parent=1 // pred_check
      _
    $region75: #{tpu_custom_call.1} parent=1 // pred_check_branch
      %154 = sbr.rel (0) target = $region77
    $region76: #{tpu_custom_call.1} parent=1 // pred_region
      %155 = dma.done [#allocation12], 512
    $region77: #{tpu_custom_call.1} parent=1 // pred_fallthru
      _
    // Predicated region
    $region78: #{tpu_custom_call.1} parent=1 // pred_check
      _
    $region79: #{tpu_custom_call.1} parent=1 // pred_check_branch
      %157 = sbr.rel (0) target = $region81
    $region80: #{tpu_custom_call.1} parent=1 // pred_region
      %158 = dma.done [#allocation12], 512
    $region81: #{tpu_custom_call.1} parent=1 // pred_fallthru
      _
    // Predicated region
    $region82: #{tpu_custom_call.1} parent=1 // pred_check
      _
    $region83: #{tpu_custom_call.1} parent=1 // pred_check_branch
      %160 = sbr.rel (0) target = $region85
    $region84: #{tpu_custom_call.1} parent=1 // pred_region
      %161 = dma.done [#allocation15], 512
    $region85: #{tpu_custom_call.1} parent=1 // pred_fallthru
      _
    // Predicated region
    $region86: #{tpu_custom_call.1} parent=1 // pred_check
      _
    $region87: #{tpu_custom_call.1} parent=1 // pred_check_branch
      %163 = sbr.rel (0) target = $region89
    $region88: #{tpu_custom_call.1} parent=1 // pred_region
      %164 = dma.done [#allocation15], 512
    $region89: #{tpu_custom_call.1} parent=1 // pred_fallthru
      _
    %v165 = vld [vmem:[#allocation2] sm:$0xff]
    %v166 = vld [vmem:[#allocation2 + $0x8] sm:$0xff]
    %v167 = vld [vmem:[#allocation5] sm:$0xff]
    %v168 = vld [vmem:[#allocation5 + $0x8] sm:$0xff]
    %v169 = vld [vmem:[#allocation7] sm:$0xff]
    %v170 = vld [vmem:[#allocation7 + $0x8] sm:$0xff]
    %v171 = vld [vmem:[%s5] sm:$0xff]
    %v172 = vld [vmem:[%s5 + $0x8] sm:$0xff]
    %v173 = vld [vmem:[%s5 + $0x10] sm:$0xff]
    %v174 = vld [vmem:[%s5 + $0x18] sm:$0xff]
    %v175 = vld [vmem:[%s6] sm:$0x1]
    %v177 = vlaneseq
    %v178 = vshrl.u32 %v177, 7
    %v179 = vsub.s32 0, %v178
    %v180 = vrot.slane %v175, %v179
    %vm182 = vcmask 261120
    %v184 = vsel %vm182, %v167, 0
    %v187 = vsel %vm182, %v168, 0
    %189 = vmatprep.subr.mxu0 0.0
    %190 = vmatpush1.msra.mxu0 0.0
    %191 = vmatprep.subr.mxu0 0.0
    %192 = vmatpush1.msra.mxu0 0.0
    %193 = vmatprep.subr.mxu0 0.0
    %194 = vmatpush1.msra.mxu0 0.0
    %195 = vmatprep.subr.mxu0 0.0
    %196 = vmatpush1.msra.mxu0 0.0
    %197 = vmatprep.subr.mxu0 0.0
    %198 = vmatpush1.msra.mxu0 0.0
    %199 = vmatprep.subr.mxu0 0.0
    %200 = vmatpush1.msra.mxu0 0.0
    %201 = vmatprep.subr.mxu0 0.0
    %202 = vmatpush1.msra.mxu0 0.0
    %203 = vmatprep.subr.mxu0 0.0
    %204 = vmatpush1.msra.mxu0 0.0
    %205 = vmatprep.subr.mxu0 0.0
    %206 = vmatpush1.msra.mxu0 0.0
    %207 = vmatprep.subr.mxu0 0.0
    %208 = vmatpush1.msra.mxu0 0.0
    %209 = vmatprep.subr.mxu0 0.0
    %210 = vmatpush1.msra.mxu0 0.0
    %211 = vmatprep.subr.mxu0 0.0
    %212 = vmatpush1.msra.mxu0 0.0
    %213 = vmatprep.subr.mxu0 0.0
    %214 = vmatpush1.msra.mxu0 %v174
    %215 = vmatprep.subr.mxu0 0.0
    %216 = vmatpush1.msra.mxu0 %v173
    %217 = vmatprep.subr.mxu0 0.0
    %218 = vmatpush1.msra.mxu0 %v172
    %219 = vmatprep.subr.mxu0 0.0
    %220 = vmatpush1.msra.mxu0 %v171
    %221 = vmatprep.subr.mxu0 0.0
    %222 = vmatpush2.msra.mxu0 0.0
    %223 = vmatprep.subr.mxu0 0.0
    %224 = vmatpush2.msra.mxu0 0.0
    %225 = vmatprep.subr.mxu0 0.0
    %226 = vmatpush2.msra.mxu0 0.0
    %227 = vmatprep.subr.mxu0 0.0
    %228 = vmatpush2.msra.mxu0 0.0
    %229 = vmatprep.subr.mxu0 0.0
    %230 = vmatpush2.msra.mxu0 0.0
    %231 = vmatprep.subr.mxu0 0.0
    %232 = vmatpush2.msra.mxu0 0.0
    %233 = vmatprep.subr.mxu0 0.0
    %234 = vmatpush2.msra.mxu0 0.0
    %235 = vmatprep.subr.mxu0 0.0
    %236 = vmatpush2.msra.mxu0 0.0
    %237 = vmatprep.subr.mxu0 0.0
    %238 = vmatpush2.msra.mxu0 0.0
    %239 = vmatprep.subr.mxu0 0.0
    %240 = vmatpush2.msra.mxu0 0.0
    %241 = vmatprep.subr.mxu0 0.0
    %242 = vmatpush2.msra.mxu0 0.0
    %243 = vmatprep.subr.mxu0 0.0
    %244 = vmatpush2.msra.mxu0 0.0
    %245 = vmatprep.subr.mxu0 0.0
    %246 = vmatpush2.msra.mxu0 0.0
    %247 = vmatprep.subr.mxu0 0.0
    %248 = vmatpush2.msra.mxu0 0.0
    %249 = vmatprep.subr.mxu0 0.0
    %250 = vmatpush2.msra.mxu0 0.0
    %251 = vmatprep.subr.mxu0 0.0
    %252 = vmatpush2.msra.mxu0 0.0
    %253 = vmatprep.mubr.f32.mxu0 0.0
    %254 = vmatmul.mubr.f32.gmra.mxu0 %v184
    %v255 = vpop.f32.mrf.mxu0
    %v256 = vadd.f32 %v180, %v255
    %v257 = vpop.f32.mrf.mxu0
    %258 = vmatprep.mubr.f32.mxu0 0.0
    %259 = vmatmul.mubr.f32.gmra.mxu0 %v187
    %v260 = vpop.f32.mrf.mxu0
    %v261 = vadd.f32 %v180, %v260
    %v262 = vpop.f32.mrf.mxu0
    %263 = vdwg.mxu0
    %v264 = vld [vmem:[#allocation10] sm:$0xff]
    %v265 = vld [vmem:[#allocation10 + $0x8] sm:$0xff]
    %v266 = vld [vmem:[#allocation10 + $0x10] sm:$0xff]
    %v267 = vld [vmem:[#allocation10 + $0x18] sm:$0xff]
    %v268 = vld [vmem:[%s8] sm:$0x1]
    %v270 = vlaneseq
    %v271 = vshrl.u32 %v270, 7
    %v272 = vsub.s32 0, %v271
    %v273 = vrot.slane %v268, %v272
    %v276 = vsel %vm182, %v169, 0
    %v279 = vsel %vm182, %v170, 0
    %281 = vmatprep.subr.mxu0 0.0
    %282 = vmatpush1.msra.mxu0 0.0
    %283 = vmatprep.subr.mxu0 0.0
    %284 = vmatpush1.msra.mxu0 0.0
    %285 = vmatprep.subr.mxu0 0.0
    %286 = vmatpush1.msra.mxu0 0.0
    %287 = vmatprep.subr.mxu0 0.0
    %288 = vmatpush1.msra.mxu0 0.0
    %289 = vmatprep.subr.mxu0 0.0
    %290 = vmatpush1.msra.mxu0 0.0
    %291 = vmatprep.subr.mxu0 0.0
    %292 = vmatpush1.msra.mxu0 0.0
    %293 = vmatprep.subr.mxu0 0.0
    %294 = vmatpush1.msra.mxu0 0.0
    %295 = vmatprep.subr.mxu0 0.0
    %296 = vmatpush1.msra.mxu0 0.0
    %297 = vmatprep.subr.mxu0 0.0
    %298 = vmatpush1.msra.mxu0 0.0
    %299 = vmatprep.subr.mxu0 0.0
    %300 = vmatpush1.msra.mxu0 0.0
    %301 = vmatprep.subr.mxu0 0.0
    %302 = vmatpush1.msra.mxu0 0.0
    %303 = vmatprep.subr.mxu0 0.0
    %304 = vmatpush1.msra.mxu0 0.0
    %305 = vmatprep.subr.mxu0 0.0
    %306 = vmatpush1.msra.mxu0 %v267
    %307 = vmatprep.subr.mxu0 0.0
    %308 = vmatpush1.msra.mxu0 %v266
    %309 = vmatprep.subr.mxu0 0.0
    %310 = vmatpush1.msra.mxu0 %v265
    %311 = vmatprep.subr.mxu0 0.0
    %312 = vmatpush1.msra.mxu0 %v264
    %313 = vmatprep.subr.mxu0 0.0
    %314 = vmatpush2.msra.mxu0 0.0
    %315 = vmatprep.subr.mxu0 0.0
    %316 = vmatpush2.msra.mxu0 0.0
    %317 = vmatprep.subr.mxu0 0.0
    %318 = vmatpush2.msra.mxu0 0.0
    %319 = vmatprep.subr.mxu0 0.0
    %320 = vmatpush2.msra.mxu0 0.0
    %321 = vmatprep.subr.mxu0 0.0
    %322 = vmatpush2.msra.mxu0 0.0
    %323 = vmatprep.subr.mxu0 0.0
    %324 = vmatpush2.msra.mxu0 0.0
    %325 = vmatprep.subr.mxu0 0.0
    %326 = vmatpush2.msra.mxu0 0.0
    %327 = vmatprep.subr.mxu0 0.0
    %328 = vmatpush2.msra.mxu0 0.0
    %329 = vmatprep.subr.mxu0 0.0
    %330 = vmatpush2.msra.mxu0 0.0
    %331 = vmatprep.subr.mxu0 0.0
    %332 = vmatpush2.msra.mxu0 0.0
    %333 = vmatprep.subr.mxu0 0.0
    %334 = vmatpush2.msra.mxu0 0.0
    %335 = vmatprep.subr.mxu0 0.0
    %336 = vmatpush2.msra.mxu0 0.0
    %337 = vmatprep.subr.mxu0 0.0
    %338 = vmatpush2.msra.mxu0 0.0
    %339 = vmatprep.subr.mxu0 0.0
    %340 = vmatpush2.msra.mxu0 0.0
    %341 = vmatprep.subr.mxu0 0.0
    %342 = vmatpush2.msra.mxu0 0.0
    %343 = vmatprep.subr.mxu0 0.0
    %344 = vmatpush2.msra.mxu0 0.0
    %345 = vmatprep.mubr.f32.mxu0 0.0
    %346 = vmatmul.mubr.f32.gmra.mxu0 %v276
    %v347 = vpop.f32.mrf.mxu0
    %v348 = vadd.f32 %v273, %v347
    %v349 = vpop.f32.mrf.mxu0
    %350 = vmatprep.mubr.f32.mxu0 0.0
    %351 = vmatmul.mubr.f32.gmra.mxu0 %v279
    %v352 = vpop.f32.mrf.mxu0
    %v353 = vadd.f32 %v273, %v352
    %v354 = vpop.f32.mrf.mxu0
    %355 = vdwg.mxu0
    %v356 = vld [vmem:[#allocation8] sm:$0xff]
    %vm357 = vcmask 130048
    %v359 = vsel %vm357, %v356, 0
    %361 = vmatprep.subr.mxu0 0.0
    %362 = vmatpush1.msra.mxu0 0.0
    %363 = vmatprep.subr.mxu0 0.0
    %364 = vmatpush1.msra.mxu0 0.0
    %365 = vmatprep.subr.mxu0 0.0
    %366 = vmatpush1.msra.mxu0 0.0
    %367 = vmatprep.subr.mxu0 0.0
    %368 = vmatpush1.msra.mxu0 0.0
    %369 = vmatprep.subr.mxu0 0.0
    %370 = vmatpush1.msra.mxu0 0.0
    %371 = vmatprep.subr.mxu0 0.0
    %372 = vmatpush1.msra.mxu0 0.0
    %373 = vmatprep.subr.mxu0 0.0
    %374 = vmatpush1.msra.mxu0 0.0
    %375 = vmatprep.subr.mxu0 0.0
    %376 = vmatpush1.msra.mxu0 0.0
    %377 = vmatprep.subr.mxu0 0.0
    %378 = vmatpush1.msra.mxu0 0.0
    %379 = vmatprep.subr.mxu0 0.0
    %380 = vmatpush1.msra.mxu0 0.0
    %381 = vmatprep.subr.mxu0 0.0
    %382 = vmatpush1.msra.mxu0 0.0
    %383 = vmatprep.subr.mxu0 0.0
    %384 = vmatpush1.msra.mxu0 0.0
    %385 = vmatprep.subr.mxu0 0.0
    %386 = vmatpush1.msra.mxu0 0.0
    %387 = vmatprep.subr.mxu0 0.0
    %388 = vmatpush1.msra.mxu0 0.0
    %389 = vmatprep.subr.mxu0 0.0
    %390 = vmatpush1.msra.mxu0 %v261
    %391 = vmatprep.subr.mxu0 0.0
    %392 = vmatpush1.msra.mxu0 %v256
    %393 = vmatprep.subr.mxu0 0.0
    %394 = vmatpush2.msra.mxu0 0.0
    %395 = vmatprep.subr.mxu0 0.0
    %396 = vmatpush2.msra.mxu0 0.0
    %397 = vmatprep.subr.mxu0 0.0
    %398 = vmatpush2.msra.mxu0 0.0
    %399 = vmatprep.subr.mxu0 0.0
    %400 = vmatpush2.msra.mxu0 0.0
    %401 = vmatprep.subr.mxu0 0.0
    %402 = vmatpush2.msra.mxu0 0.0
    %403 = vmatprep.subr.mxu0 0.0
    %404 = vmatpush2.msra.mxu0 0.0
    %405 = vmatprep.subr.mxu0 0.0
    %406 = vmatpush2.msra.mxu0 0.0
    %407 = vmatprep.subr.mxu0 0.0
    %408 = vmatpush2.msra.mxu0 0.0
    %409 = vmatprep.subr.mxu0 0.0
    %410 = vmatpush2.msra.mxu0 0.0
    %411 = vmatprep.subr.mxu0 0.0
    %412 = vmatpush2.msra.mxu0 0.0
    %413 = vmatprep.subr.mxu0 0.0
    %414 = vmatpush2.msra.mxu0 0.0
    %415 = vmatprep.subr.mxu0 0.0
    %416 = vmatpush2.msra.mxu0 0.0
    %417 = vmatprep.subr.mxu0 0.0
    %418 = vmatpush2.msra.mxu0 0.0
    %419 = vmatprep.subr.mxu0 0.0
    %420 = vmatpush2.msra.mxu0 0.0
    %421 = vmatprep.subr.mxu0 0.0
    %422 = vmatpush2.msra.mxu0 0.0
    %423 = vmatprep.subr.mxu0 0.0
    %424 = vmatpush2.msra.mxu0 0.0
    %425 = vmatprep.mubr.f32.mxu0 0.0
    %426 = vmatmul.mubr.f32.gmra.mxu0 %v359
    %v427 = vpop.f32.mrf.mxu0
    %v428 = vadd.f32 0.0, %v427
    %v429 = vpop.f32.mrf.mxu0
    %430 = vdwg.mxu0
    %431 = vmatprep.subr.mxu0 0.0
    %432 = vmatpush1.msra.mxu0 0.0
    %433 = vmatprep.subr.mxu0 0.0
    %434 = vmatpush1.msra.mxu0 0.0
    %435 = vmatprep.subr.mxu0 0.0
    %436 = vmatpush1.msra.mxu0 0.0
    %437 = vmatprep.subr.mxu0 0.0
    %438 = vmatpush1.msra.mxu0 0.0
    %439 = vmatprep.subr.mxu0 0.0
    %440 = vmatpush1.msra.mxu0 0.0
    %441 = vmatprep.subr.mxu0 0.0
    %442 = vmatpush1.msra.mxu0 0.0
    %443 = vmatprep.subr.mxu0 0.0
    %444 = vmatpush1.msra.mxu0 0.0
    %445 = vmatprep.subr.mxu0 0.0
    %446 = vmatpush1.msra.mxu0 0.0
    %447 = vmatprep.subr.mxu0 0.0
    %448 = vmatpush1.msra.mxu0 0.0
    %449 = vmatprep.subr.mxu0 0.0
    %450 = vmatpush1.msra.mxu0 0.0
    %451 = vmatprep.subr.mxu0 0.0
    %452 = vmatpush1.msra.mxu0 0.0
    %453 = vmatprep.subr.mxu0 0.0
    %454 = vmatpush1.msra.mxu0 0.0
    %455 = vmatprep.subr.mxu0 0.0
    %456 = vmatpush1.msra.mxu0 0.0
    %457 = vmatprep.subr.mxu0 0.0
    %458 = vmatpush1.msra.mxu0 0.0
    %459 = vmatprep.subr.mxu0 0.0
    %460 = vmatpush1.msra.mxu0 %v353
    %461 = vmatprep.subr.mxu0 0.0
    %462 = vmatpush1.msra.mxu0 %v348
    %463 = vmatprep.subr.mxu0 0.0
    %464 = vmatpush2.msra.mxu0 0.0
    %465 = vmatprep.subr.mxu0 0.0
    %466 = vmatpush2.msra.mxu0 0.0
    %467 = vmatprep.subr.mxu0 0.0
    %468 = vmatpush2.msra.mxu0 0.0
    %469 = vmatprep.subr.mxu0 0.0
    %470 = vmatpush2.msra.mxu0 0.0
    %471 = vmatprep.subr.mxu0 0.0
    %472 = vmatpush2.msra.mxu0 0.0
    %473 = vmatprep.subr.mxu0 0.0
    %474 = vmatpush2.msra.mxu0 0.0
    %475 = vmatprep.subr.mxu0 0.0
    %476 = vmatpush2.msra.mxu0 0.0
    %477 = vmatprep.subr.mxu0 0.0
    %478 = vmatpush2.msra.mxu0 0.0
    %479 = vmatprep.subr.mxu0 0.0
    %480 = vmatpush2.msra.mxu0 0.0
    %481 = vmatprep.subr.mxu0 0.0
    %482 = vmatpush2.msra.mxu0 0.0
    %483 = vmatprep.subr.mxu0 0.0
    %484 = vmatpush2.msra.mxu0 0.0
    %485 = vmatprep.subr.mxu0 0.0
    %486 = vmatpush2.msra.mxu0 0.0
    %487 = vmatprep.subr.mxu0 0.0
    %488 = vmatpush2.msra.mxu0 0.0
    %489 = vmatprep.subr.mxu0 0.0
    %490 = vmatpush2.msra.mxu0 0.0
    %491 = vmatprep.subr.mxu0 0.0
    %492 = vmatpush2.msra.mxu0 0.0
    %493 = vmatprep.subr.mxu0 0.0
    %494 = vmatpush2.msra.mxu0 0.0
    %495 = vmatprep.mubr.f32.mxu0 0.0
    %496 = vmatmul.mubr.f32.gmra.mxu0 %v359
    %v497 = vpop.f32.mrf.mxu0
    %v498 = vadd.f32 0.0, %v497
    %v499 = vpop.f32.mrf.mxu0
    %500 = vdwg.mxu0
    %v501 = vld [vmem:[#allocation11] sm:$0xff]
    %v502 = vld [vmem:[#allocation11 + $0x8] sm:$0xff]
    %v503 = vld [vmem:[#allocation11 + $0x10] sm:$0xff]
    %v504 = vld [vmem:[#allocation11 + $0x18] sm:$0xff]
    %v506 = vsel %vm182, %v165, 0
    %v509 = vsel %vm182, %v166, 0
    %511 = vmatprep.subr.mxu0 0.0
    %512 = vmatpush1.msra.mxu0 0.0
    %513 = vmatprep.subr.mxu0 0.0
    %514 = vmatpush1.msra.mxu0 0.0
    %515 = vmatprep.subr.mxu0 0.0
    %516 = vmatpush1.msra.mxu0 0.0
    %517 = vmatprep.subr.mxu0 0.0
    %518 = vmatpush1.msra.mxu0 0.0
    %519 = vmatprep.subr.mxu0 0.0
    %520 = vmatpush1.msra.mxu0 0.0
    %521 = vmatprep.subr.mxu0 0.0
    %522 = vmatpush1.msra.mxu0 0.0
    %523 = vmatprep.subr.mxu0 0.0
    %524 = vmatpush1.msra.mxu0 0.0
    %525 = vmatprep.subr.mxu0 0.0
    %526 = vmatpush1.msra.mxu0 0.0
    %527 = vmatprep.subr.mxu0 0.0
    %528 = vmatpush1.msra.mxu0 0.0
    %529 = vmatprep.subr.mxu0 0.0
    %530 = vmatpush1.msra.mxu0 0.0
    %531 = vmatprep.subr.mxu0 0.0
    %532 = vmatpush1.msra.mxu0 0.0
    %533 = vmatprep.subr.mxu0 0.0
    %534 = vmatpush1.msra.mxu0 0.0
    %535 = vmatprep.subr.mxu0 0.0
    %536 = vmatpush1.msra.mxu0 %v504
    %537 = vmatprep.subr.mxu0 0.0
    %538 = vmatpush1.msra.mxu0 %v503
    %539 = vmatprep.subr.mxu0 0.0
    %540 = vmatpush1.msra.mxu0 %v502
    %541 = vmatprep.subr.mxu0 0.0
    %542 = vmatpush1.msra.mxu0 %v501
    %543 = vmatprep.subr.mxu0 0.0
    %544 = vmatpush2.msra.mxu0 0.0
    %545 = vmatprep.subr.mxu0 0.0
    %546 = vmatpush2.msra.mxu0 0.0
    %547 = vmatprep.subr.mxu0 0.0
    %548 = vmatpush2.msra.mxu0 0.0
    %549 = vmatprep.subr.mxu0 0.0
    %550 = vmatpush2.msra.mxu0 0.0
    %551 = vmatprep.subr.mxu0 0.0
    %552 = vmatpush2.msra.mxu0 0.0
    %553 = vmatprep.subr.mxu0 0.0
    %554 = vmatpush2.msra.mxu0 0.0
    %555 = vmatprep.subr.mxu0 0.0
    %556 = vmatpush2.msra.mxu0 0.0
    %557 = vmatprep.subr.mxu0 0.0
    %558 = vmatpush2.msra.mxu0 0.0
    %559 = vmatprep.subr.mxu0 0.0
    %560 = vmatpush2.msra.mxu0 0.0
    %561 = vmatprep.subr.mxu0 0.0
    %562 = vmatpush2.msra.mxu0 0.0
    %563 = vmatprep.subr.mxu0 0.0
    %564 = vmatpush2.msra.mxu0 0.0
    %565 = vmatprep.subr.mxu0 0.0
    %566 = vmatpush2.msra.mxu0 0.0
    %567 = vmatprep.subr.mxu0 0.0
    %568 = vmatpush2.msra.mxu0 0.0
    %569 = vmatprep.subr.mxu0 0.0
    %570 = vmatpush2.msra.mxu0 0.0
    %571 = vmatprep.subr.mxu0 0.0
    %572 = vmatpush2.msra.mxu0 0.0
    %573 = vmatprep.subr.mxu0 0.0
    %574 = vmatpush2.msra.mxu0 0.0
    %575 = vmatprep.mubr.f32.mxu0 0.0
    %576 = vmatmul.mubr.f32.gmra.mxu0 %v506
    %v577 = vpop.f32.mrf.mxu0
    %v578 = vadd.f32 0.0, %v577
    %v579 = vpop.f32.mrf.mxu0
    %580 = vmatprep.mubr.f32.mxu0 0.0
    %581 = vmatmul.mubr.f32.gmra.mxu0 %v509
    %v582 = vpop.f32.mrf.mxu0
    %v583 = vadd.f32 0.0, %v582
    %v584 = vpop.f32.mrf.mxu0
    %585 = vdwg.mxu0
    %v586 = vld [vmem:[#allocation13] sm:$0xff]
    %v587 = vld [vmem:[#allocation13 + $0x8] sm:$0xff]
    %v588 = vld [vmem:[#allocation13 + $0x10] sm:$0xff]
    %v589 = vld [vmem:[#allocation13 + $0x18] sm:$0xff]
    %v591 = vsel %vm182, %v428, 0
    %593 = vmatprep.subr.mxu0 0.0
    %594 = vmatpush1.msra.mxu0 0.0
    %595 = vmatprep.subr.mxu0 0.0
    %596 = vmatpush1.msra.mxu0 0.0
    %597 = vmatprep.subr.mxu0 0.0
    %598 = vmatpush1.msra.mxu0 0.0
    %599 = vmatprep.subr.mxu0 0.0
    %600 = vmatpush1.msra.mxu0 0.0
    %601 = vmatprep.subr.mxu0 0.0
    %602 = vmatpush1.msra.mxu0 0.0
    %603 = vmatprep.subr.mxu0 0.0
    %604 = vmatpush1.msra.mxu0 0.0
    %605 = vmatprep.subr.mxu0 0.0
    %606 = vmatpush1.msra.mxu0 0.0
    %607 = vmatprep.subr.mxu0 0.0
    %608 = vmatpush1.msra.mxu0 0.0
    %609 = vmatprep.subr.mxu0 0.0
    %610 = vmatpush1.msra.mxu0 0.0
    %611 = vmatprep.subr.mxu0 0.0
    %612 = vmatpush1.msra.mxu0 0.0
    %613 = vmatprep.subr.mxu0 0.0
    %614 = vmatpush1.msra.mxu0 0.0
    %615 = vmatprep.subr.mxu0 0.0
    %616 = vmatpush1.msra.mxu0 0.0
    %617 = vmatprep.subr.mxu0 0.0
    %618 = vmatpush1.msra.mxu0 %v589
    %619 = vmatprep.subr.mxu0 0.0
    %620 = vmatpush1.msra.mxu0 %v588
    %621 = vmatprep.subr.mxu0 0.0
    %622 = vmatpush1.msra.mxu0 %v587
    %623 = vmatprep.subr.mxu0 0.0
    %624 = vmatpush1.msra.mxu0 %v586
    %625 = vmatprep.subr.mxu0 0.0
    %626 = vmatpush2.msra.mxu0 0.0
    %627 = vmatprep.subr.mxu0 0.0
    %628 = vmatpush2.msra.mxu0 0.0
    %629 = vmatprep.subr.mxu0 0.0
    %630 = vmatpush2.msra.mxu0 0.0
    %631 = vmatprep.subr.mxu0 0.0
    %632 = vmatpush2.msra.mxu0 0.0
    %633 = vmatprep.subr.mxu0 0.0
    %634 = vmatpush2.msra.mxu0 0.0
    %635 = vmatprep.subr.mxu0 0.0
    %636 = vmatpush2.msra.mxu0 0.0
    %637 = vmatprep.subr.mxu0 0.0
    %638 = vmatpush2.msra.mxu0 0.0
    %639 = vmatprep.subr.mxu0 0.0
    %640 = vmatpush2.msra.mxu0 0.0
    %641 = vmatprep.subr.mxu0 0.0
    %642 = vmatpush2.msra.mxu0 0.0
    %643 = vmatprep.subr.mxu0 0.0
    %644 = vmatpush2.msra.mxu0 0.0
    %645 = vmatprep.subr.mxu0 0.0
    %646 = vmatpush2.msra.mxu0 0.0
    %647 = vmatprep.subr.mxu0 0.0
    %648 = vmatpush2.msra.mxu0 0.0
    %649 = vmatprep.subr.mxu0 0.0
    %650 = vmatpush2.msra.mxu0 0.0
    %651 = vmatprep.subr.mxu0 0.0
    %652 = vmatpush2.msra.mxu0 0.0
    %653 = vmatprep.subr.mxu0 0.0
    %654 = vmatpush2.msra.mxu0 0.0
    %655 = vmatprep.subr.mxu0 0.0
    %656 = vmatpush2.msra.mxu0 0.0
    %657 = vmatprep.mubr.f32.mxu0 0.0
    %658 = vmatmul.mubr.f32.gmra.mxu0 %v591
    %v659 = vpop.f32.mrf.mxu0
    %v660 = vadd.f32 0.0, %v659
    %v661 = vpop.f32.mrf.mxu0
    %662 = vdwg.mxu0
    %v663 = vld [vmem:[#allocation14] sm:$0xff]
    %v664 = vld [vmem:[#allocation14 + $0x8] sm:$0xff]
    %v665 = vld [vmem:[#allocation14 + $0x10] sm:$0xff]
    %v666 = vld [vmem:[#allocation14 + $0x18] sm:$0xff]
    %v668 = vsel %vm182, %v498, 0
    %670 = vmatprep.subr.mxu0 0.0
    %671 = vmatpush1.msra.mxu0 0.0
    %672 = vmatprep.subr.mxu0 0.0
    %673 = vmatpush1.msra.mxu0 0.0
    %674 = vmatprep.subr.mxu0 0.0
    %675 = vmatpush1.msra.mxu0 0.0
    %676 = vmatprep.subr.mxu0 0.0
    %677 = vmatpush1.msra.mxu0 0.0
    %678 = vmatprep.subr.mxu0 0.0
    %679 = vmatpush1.msra.mxu0 0.0
    %680 = vmatprep.subr.mxu0 0.0
    %681 = vmatpush1.msra.mxu0 0.0
    %682 = vmatprep.subr.mxu0 0.0
    %683 = vmatpush1.msra.mxu0 0.0
    %684 = vmatprep.subr.mxu0 0.0
    %685 = vmatpush1.msra.mxu0 0.0
    %686 = vmatprep.subr.mxu0 0.0
    %687 = vmatpush1.msra.mxu0 0.0
    %688 = vmatprep.subr.mxu0 0.0
    %689 = vmatpush1.msra.mxu0 0.0
    %690 = vmatprep.subr.mxu0 0.0
    %691 = vmatpush1.msra.mxu0 0.0
    %692 = vmatprep.subr.mxu0 0.0
    %693 = vmatpush1.msra.mxu0 0.0
    %694 = vmatprep.subr.mxu0 0.0
    %695 = vmatpush1.msra.mxu0 %v666
    %696 = vmatprep.subr.mxu0 0.0
    %697 = vmatpush1.msra.mxu0 %v665
    %698 = vmatprep.subr.mxu0 0.0
    %699 = vmatpush1.msra.mxu0 %v664
    %700 = vmatprep.subr.mxu0 0.0
    %701 = vmatpush1.msra.mxu0 %v663
    %702 = vmatprep.subr.mxu0 0.0
    %703 = vmatpush2.msra.mxu0 0.0
    %704 = vmatprep.subr.mxu0 0.0
    %705 = vmatpush2.msra.mxu0 0.0
    %706 = vmatprep.subr.mxu0 0.0
    %707 = vmatpush2.msra.mxu0 0.0
    %708 = vmatprep.subr.mxu0 0.0
    %709 = vmatpush2.msra.mxu0 0.0
    %710 = vmatprep.subr.mxu0 0.0
    %711 = vmatpush2.msra.mxu0 0.0
    %712 = vmatprep.subr.mxu0 0.0
    %713 = vmatpush2.msra.mxu0 0.0
    %714 = vmatprep.subr.mxu0 0.0
    %715 = vmatpush2.msra.mxu0 0.0
    %716 = vmatprep.subr.mxu0 0.0
    %717 = vmatpush2.msra.mxu0 0.0
    %718 = vmatprep.subr.mxu0 0.0
    %719 = vmatpush2.msra.mxu0 0.0
    %720 = vmatprep.subr.mxu0 0.0
    %721 = vmatpush2.msra.mxu0 0.0
    %722 = vmatprep.subr.mxu0 0.0
    %723 = vmatpush2.msra.mxu0 0.0
    %724 = vmatprep.subr.mxu0 0.0
    %725 = vmatpush2.msra.mxu0 0.0
    %726 = vmatprep.subr.mxu0 0.0
    %727 = vmatpush2.msra.mxu0 0.0
    %728 = vmatprep.subr.mxu0 0.0
    %729 = vmatpush2.msra.mxu0 0.0
    %730 = vmatprep.subr.mxu0 0.0
    %731 = vmatpush2.msra.mxu0 0.0
    %732 = vmatprep.subr.mxu0 0.0
    %733 = vmatpush2.msra.mxu0 0.0
    %734 = vmatprep.mubr.f32.mxu0 0.0
    %735 = vmatmul.mubr.f32.gmra.mxu0 %v668
    %v736 = vpop.f32.mrf.mxu0
    %v737 = vadd.f32 0.0, %v736
    %v738 = vpop.f32.mrf.mxu0
    %739 = vdwg.mxu0
    %v740 = vld [vmem:[%s4] sm:$0xff]
    %v741 = vld [vmem:[%s4 + $0x8] sm:$0xff]
    %v743 = vsel %vm357, %v578, 0
    %v746 = vsel %vm357, %v583, 0
    %v749 = vsel %vm357, %v660, 0
    %751 = vmatprep.subr.mxu0 0.0
    %752 = vmatpush1.xpose.msra.mxu0 0.0
    %753 = vmatprep.subr.mxu0 0.0
    %754 = vmatpush1.xpose.msra.mxu0 0.0
    %755 = vmatprep.subr.mxu0 0.0
    %756 = vmatpush1.xpose.msra.mxu0 0.0
    %757 = vmatprep.subr.mxu0 0.0
    %758 = vmatpush1.xpose.msra.mxu0 0.0
    %759 = vmatprep.subr.mxu0 0.0
    %760 = vmatpush1.xpose.msra.mxu0 0.0
    %761 = vmatprep.subr.mxu0 0.0
    %762 = vmatpush1.xpose.msra.mxu0 0.0
    %763 = vmatprep.subr.mxu0 0.0
    %764 = vmatpush1.xpose.msra.mxu0 0.0
    %765 = vmatprep.subr.mxu0 0.0
    %766 = vmatpush1.xpose.msra.mxu0 0.0
    %767 = vmatprep.subr.mxu0 0.0
    %768 = vmatpush1.xpose.msra.mxu0 0.0
    %769 = vmatprep.subr.mxu0 0.0
    %770 = vmatpush1.xpose.msra.mxu0 0.0
    %771 = vmatprep.subr.mxu0 0.0
    %772 = vmatpush1.xpose.msra.mxu0 0.0
    %773 = vmatprep.subr.mxu0 0.0
    %774 = vmatpush1.xpose.msra.mxu0 0.0
    %775 = vmatprep.subr.mxu0 0.0
    %776 = vmatpush1.xpose.msra.mxu0 0.0
    %777 = vmatprep.subr.mxu0 0.0
    %778 = vmatpush1.xpose.msra.mxu0 0.0
    %779 = vmatprep.subr.mxu0 0.0
    %780 = vmatpush1.xpose.msra.mxu0 0.0
    %781 = vmatprep.subr.mxu0 0.0
    %782 = vmatpush1.xpose.msra.mxu0 %v749
    %783 = vmatprep.subr.mxu0 0.0
    %784 = vmatpush2.xpose.msra.mxu0 0.0
    %785 = vmatprep.subr.mxu0 0.0
    %786 = vmatpush2.xpose.msra.mxu0 0.0
    %787 = vmatprep.subr.mxu0 0.0
    %788 = vmatpush2.xpose.msra.mxu0 0.0
    %789 = vmatprep.subr.mxu0 0.0
    %790 = vmatpush2.xpose.msra.mxu0 0.0
    %791 = vmatprep.subr.mxu0 0.0
    %792 = vmatpush2.xpose.msra.mxu0 0.0
    %793 = vmatprep.subr.mxu0 0.0
    %794 = vmatpush2.xpose.msra.mxu0 0.0
    %795 = vmatprep.subr.mxu0 0.0
    %796 = vmatpush2.xpose.msra.mxu0 0.0
    %797 = vmatprep.subr.mxu0 0.0
    %798 = vmatpush2.xpose.msra.mxu0 0.0
    %799 = vmatprep.subr.mxu0 0.0
    %800 = vmatpush2.xpose.msra.mxu0 0.0
    %801 = vmatprep.subr.mxu0 0.0
    %802 = vmatpush2.xpose.msra.mxu0 0.0
    %803 = vmatprep.subr.mxu0 0.0
    %804 = vmatpush2.xpose.msra.mxu0 0.0
    %805 = vmatprep.subr.mxu0 0.0
    %806 = vmatpush2.xpose.msra.mxu0 0.0
    %807 = vmatprep.subr.mxu0 0.0
    %808 = vmatpush2.xpose.msra.mxu0 0.0
    %809 = vmatprep.subr.mxu0 0.0
    %810 = vmatpush2.xpose.msra.mxu0 0.0
    %811 = vmatprep.subr.mxu0 0.0
    %812 = vmatpush2.xpose.msra.mxu0 0.0
    %813 = vmatprep.subr.mxu0 0.0
    %814 = vmatpush2.xpose.msra.mxu0 0.0
    %815 = vmatprep.mubr.f32.mxu0 0.0
    %816 = vmatmul.mubr.f32.gmra.mxu0 %v743
    %v817 = vpop.f32.mrf.mxu0
    %v818 = vadd.f32 0.0, %v817
    %v819 = vpop.f32.mrf.mxu0
    %820 = vmatprep.mubr.f32.mxu0 0.0
    %821 = vmatmul.mubr.f32.gmra.mxu0 %v746
    %v822 = vpop.f32.mrf.mxu0
    %v823 = vadd.f32 0.0, %v822
    %v824 = vpop.f32.mrf.mxu0
    %825 = vdwg.mxu0
    %v826 = vmul.f32 %v818, 0.25
    %v827 = vmul.f32 %v823, 0.25
    %v828 = vadd.f32 %v826, %v740
    %v829 = vadd.f32 %v827, %v741
    %vm830 = vcmask 64512
    %v831 = vsel %vm830, %v828, -inf
    %832 = vmax.xlane.f32.xlu0 %v831
    %v833 = vpop.xlane.xlu0 %832
    %v834 = vsel %vm830, %v829, -inf
    %835 = vmax.xlane.f32.xlu0 %v834
    %v836 = vpop.xlane.xlu0 %835
    %v837 = vsub.f32 %v828, %v833
    %v838 = vsub.f32 %v829, %v836
    %v839 = vmul.f32 %v837, 1.442695
    %v840 = vpow.pop %v839
    %v841 = vmul.f32 %v838, 1.442695
    %v842 = vpow.pop %v841
    %v843 = vsel %vm830, %v840, 0.0
    %844 = vadd.xlane.f32.xlu0 %v843
    %v845 = vpop.xlane.xlu0 %844
    %v846 = vsel %vm830, %v842, 0.0
    %847 = vadd.xlane.f32.xlu0 %v846
    %v848 = vpop.xlane.xlu0 %847
    %v849 = vrcp.pop %v845
    %v850 = vrcp.pop %v848
    %v851 = vmul.f32 %v840, %v849
    %v852 = vmul.f32 %v842, %v850
    %v854 = vsel %vm830, %v851, 0
    %v857 = vsel %vm830, %v852, 0
    %859 = vmatprep.subr.mxu0 0.0
    %860 = vmatpush1.msra.mxu0 0.0
    %861 = vmatprep.subr.mxu0 0.0
    %862 = vmatpush1.msra.mxu0 0.0
    %863 = vmatprep.subr.mxu0 0.0
    %864 = vmatpush1.msra.mxu0 0.0
    %865 = vmatprep.subr.mxu0 0.0
    %866 = vmatpush1.msra.mxu0 0.0
    %867 = vmatprep.subr.mxu0 0.0
    %868 = vmatpush1.msra.mxu0 0.0
    %869 = vmatprep.subr.mxu0 0.0
    %870 = vmatpush1.msra.mxu0 0.0
    %871 = vmatprep.subr.mxu0 0.0
    %872 = vmatpush1.msra.mxu0 0.0
    %873 = vmatprep.subr.mxu0 0.0
    %874 = vmatpush1.msra.mxu0 0.0
    %875 = vmatprep.subr.mxu0 0.0
    %876 = vmatpush1.msra.mxu0 0.0
    %877 = vmatprep.subr.mxu0 0.0
    %878 = vmatpush1.msra.mxu0 0.0
    %879 = vmatprep.subr.mxu0 0.0
    %880 = vmatpush1.msra.mxu0 0.0
    %881 = vmatprep.subr.mxu0 0.0
    %882 = vmatpush1.msra.mxu0 0.0
    %883 = vmatprep.subr.mxu0 0.0
    %884 = vmatpush1.msra.mxu0 0.0
    %885 = vmatprep.subr.mxu0 0.0
    %886 = vmatpush1.msra.mxu0 0.0
    %887 = vmatprep.subr.mxu0 0.0
    %888 = vmatpush1.msra.mxu0 0.0
    %889 = vmatprep.subr.mxu0 0.0
    %890 = vmatpush1.msra.mxu0 %v737
    %891 = vmatprep.subr.mxu0 0.0
    %892 = vmatpush2.msra.mxu0 0.0
    %893 = vmatprep.subr.mxu0 0.0
    %894 = vmatpush2.msra.mxu0 0.0
    %895 = vmatprep.subr.mxu0 0.0
    %896 = vmatpush2.msra.mxu0 0.0
    %897 = vmatprep.subr.mxu0 0.0
    %898 = vmatpush2.msra.mxu0 0.0
    %899 = vmatprep.subr.mxu0 0.0
    %900 = vmatpush2.msra.mxu0 0.0
    %901 = vmatprep.subr.mxu0 0.0
    %902 = vmatpush2.msra.mxu0 0.0
    %903 = vmatprep.subr.mxu0 0.0
    %904 = vmatpush2.msra.mxu0 0.0
    %905 = vmatprep.subr.mxu0 0.0
    %906 = vmatpush2.msra.mxu0 0.0
    %907 = vmatprep.subr.mxu0 0.0
    %908 = vmatpush2.msra.mxu0 0.0
    %909 = vmatprep.subr.mxu0 0.0
    %910 = vmatpush2.msra.mxu0 0.0
    %911 = vmatprep.subr.mxu0 0.0
    %912 = vmatpush2.msra.mxu0 0.0
    %913 = vmatprep.subr.mxu0 0.0
    %914 = vmatpush2.msra.mxu0 0.0
    %915 = vmatprep.subr.mxu0 0.0
    %916 = vmatpush2.msra.mxu0 0.0
    %917 = vmatprep.subr.mxu0 0.0
    %918 = vmatpush2.msra.mxu0 0.0
    %919 = vmatprep.subr.mxu0 0.0
    %920 = vmatpush2.msra.mxu0 0.0
    %921 = vmatprep.subr.mxu0 0.0
    %922 = vmatpush2.msra.mxu0 0.0
    %923 = vmatprep.mubr.f32.mxu0 0.0
    %924 = vmatmul.mubr.f32.gmra.mxu0 %v854
    %v925 = vpop.f32.mrf.mxu0
    %v926 = vadd.f32 0.0, %v925
    %v927 = vpop.f32.mrf.mxu0
    %928 = vmatprep.mubr.f32.mxu0 0.0
    %929 = vmatmul.mubr.f32.gmra.mxu0 %v857
    %v930 = vpop.f32.mrf.mxu0
    %v931 = vadd.f32 0.0, %v930
    %v932 = vpop.f32.mrf.mxu0
    %933 = vdwg.mxu0
    %v934 = vld [vmem:[#allocation16] sm:$0xff]
    %v935 = vld [vmem:[#allocation16 + $0x8] sm:$0xff]
    %936 = vrot.lane.b32.xlu0 %v578, 112
    %v937 = vpop.permute.xlu0 %936
    %938 = vrot.lane.b32.xlu0 %v583, 112
    %v939 = vpop.permute.xlu0 %938
    %940 = vrot.lane.b32.xlu0 %v660, 112
    %v941 = vpop.permute.xlu0 %940
    %v942 = vsel %vm357, %v937, 0
    %v944 = vsel %vm357, %v939, 0
    %v946 = vsel %vm357, %v941, 0
    %948 = vmatprep.subr.mxu0 0.0
    %949 = vmatpush1.xpose.msra.mxu0 0.0
    %950 = vmatprep.subr.mxu0 0.0
    %951 = vmatpush1.xpose.msra.mxu0 0.0
    %952 = vmatprep.subr.mxu0 0.0
    %953 = vmatpush1.xpose.msra.mxu0 0.0
    %954 = vmatprep.subr.mxu0 0.0
    %955 = vmatpush1.xpose.msra.mxu0 0.0
    %956 = vmatprep.subr.mxu0 0.0
    %957 = vmatpush1.xpose.msra.mxu0 0.0
    %958 = vmatprep.subr.mxu0 0.0
    %959 = vmatpush1.xpose.msra.mxu0 0.0
    %960 = vmatprep.subr.mxu0 0.0
    %961 = vmatpush1.xpose.msra.mxu0 0.0
    %962 = vmatprep.subr.mxu0 0.0
    %963 = vmatpush1.xpose.msra.mxu0 0.0
    %964 = vmatprep.subr.mxu0 0.0
    %965 = vmatpush1.xpose.msra.mxu0 0.0
    %966 = vmatprep.subr.mxu0 0.0
    %967 = vmatpush1.xpose.msra.mxu0 0.0
    %968 = vmatprep.subr.mxu0 0.0
    %969 = vmatpush1.xpose.msra.mxu0 0.0
    %970 = vmatprep.subr.mxu0 0.0
    %971 = vmatpush1.xpose.msra.mxu0 0.0
    %972 = vmatprep.subr.mxu0 0.0
    %973 = vmatpush1.xpose.msra.mxu0 0.0
    %974 = vmatprep.subr.mxu0 0.0
    %975 = vmatpush1.xpose.msra.mxu0 0.0
    %976 = vmatprep.subr.mxu0 0.0
    %977 = vmatpush1.xpose.msra.mxu0 0.0
    %978 = vmatprep.subr.mxu0 0.0
    %979 = vmatpush1.xpose.msra.mxu0 %v946
    %980 = vmatprep.subr.mxu0 0.0
    %981 = vmatpush2.xpose.msra.mxu0 0.0
    %982 = vmatprep.subr.mxu0 0.0
    %983 = vmatpush2.xpose.msra.mxu0 0.0
    %984 = vmatprep.subr.mxu0 0.0
    %985 = vmatpush2.xpose.msra.mxu0 0.0
    %986 = vmatprep.subr.mxu0 0.0
    %987 = vmatpush2.xpose.msra.mxu0 0.0
    %988 = vmatprep.subr.mxu0 0.0
    %989 = vmatpush2.xpose.msra.mxu0 0.0
    %990 = vmatprep.subr.mxu0 0.0
    %991 = vmatpush2.xpose.msra.mxu0 0.0
    %992 = vmatprep.subr.mxu0 0.0
    %993 = vmatpush2.xpose.msra.mxu0 0.0
    %994 = vmatprep.subr.mxu0 0.0
    %995 = vmatpush2.xpose.msra.mxu0 0.0
    %996 = vmatprep.subr.mxu0 0.0
    %997 = vmatpush2.xpose.msra.mxu0 0.0
    %998 = vmatprep.subr.mxu0 0.0
    %999 = vmatpush2.xpose.msra.mxu0 0.0
    %1000 = vmatprep.subr.mxu0 0.0
    %1001 = vmatpush2.xpose.msra.mxu0 0.0
    %1002 = vmatprep.subr.mxu0 0.0
    %1003 = vmatpush2.xpose.msra.mxu0 0.0
    %1004 = vmatprep.subr.mxu0 0.0
    %1005 = vmatpush2.xpose.msra.mxu0 0.0
    %1006 = vmatprep.subr.mxu0 0.0
    %1007 = vmatpush2.xpose.msra.mxu0 0.0
    %1008 = vmatprep.subr.mxu0 0.0
    %1009 = vmatpush2.xpose.msra.mxu0 0.0
    %1010 = vmatprep.subr.mxu0 0.0
    %1011 = vmatpush2.xpose.msra.mxu0 0.0
    %1012 = vmatprep.mubr.f32.mxu0 0.0
    %1013 = vmatmul.mubr.f32.gmra.mxu0 %v942
    %v1014 = vpop.f32.mrf.mxu0
    %v1015 = vadd.f32 0.0, %v1014
    %v1016 = vpop.f32.mrf.mxu0
    %1017 = vmatprep.mubr.f32.mxu0 0.0
    %1018 = vmatmul.mubr.f32.gmra.mxu0 %v944
    %v1019 = vpop.f32.mrf.mxu0
    %v1020 = vadd.f32 0.0, %v1019
    %v1021 = vpop.f32.mrf.mxu0
    %1022 = vdwg.mxu0
    %v1023 = vmul.f32 %v1015, 0.25
    %v1024 = vmul.f32 %v1020, 0.25
    %v1025 = vadd.f32 %v1023, %v740
    %v1026 = vadd.f32 %v1024, %v741
    %v1027 = vsel %vm830, %v1025, -inf
    %1028 = vmax.xlane.f32.xlu0 %v1027
    %v1029 = vpop.xlane.xlu0 %1028
    %v1030 = vsel %vm830, %v1026, -inf
    %1031 = vmax.xlane.f32.xlu0 %v1030
    %v1032 = vpop.xlane.xlu0 %1031
    %v1033 = vsub.f32 %v1025, %v1029
    %v1034 = vsub.f32 %v1026, %v1032
    %v1035 = vmul.f32 %v1033, 1.442695
    %v1036 = vpow.pop %v1035
    %v1037 = vmul.f32 %v1034, 1.442695
    %v1038 = vpow.pop %v1037
    %v1039 = vsel %vm830, %v1036, 0.0
    %1040 = vadd.xlane.f32.xlu0 %v1039
    %v1041 = vpop.xlane.xlu0 %1040
    %v1042 = vsel %vm830, %v1038, 0.0
    %1043 = vadd.xlane.f32.xlu0 %v1042
    %v1044 = vpop.xlane.xlu0 %1043
    %v1045 = vrcp.pop %v1041
    %v1046 = vrcp.pop %v1044
    %v1047 = vmul.f32 %v1036, %v1045
    %v1048 = vmul.f32 %v1038, %v1046
    %1050 = vrot.lane.b32.xlu0 %v737, 112
    %v1051 = vpop.permute.xlu0 %1050
    %v1054 = vsel %vm830, %v1047, 0
    %v1057 = vsel %vm830, %v1048, 0
    %1059 = vmatprep.subr.mxu0 0.0
    %1060 = vmatpush1.msra.mxu0 0.0
    %1061 = vmatprep.subr.mxu0 0.0
    %1062 = vmatpush1.msra.mxu0 0.0
    %1063 = vmatprep.subr.mxu0 0.0
    %1064 = vmatpush1.msra.mxu0 0.0
    %1065 = vmatprep.subr.mxu0 0.0
    %1066 = vmatpush1.msra.mxu0 0.0
    %1067 = vmatprep.subr.mxu0 0.0
    %1068 = vmatpush1.msra.mxu0 0.0
    %1069 = vmatprep.subr.mxu0 0.0
    %1070 = vmatpush1.msra.mxu0 0.0
    %1071 = vmatprep.subr.mxu0 0.0
    %1072 = vmatpush1.msra.mxu0 0.0
    %1073 = vmatprep.subr.mxu0 0.0
    %1074 = vmatpush1.msra.mxu0 0.0
    %1075 = vmatprep.subr.mxu0 0.0
    %1076 = vmatpush1.msra.mxu0 0.0
    %1077 = vmatprep.subr.mxu0 0.0
    %1078 = vmatpush1.msra.mxu0 0.0
    %1079 = vmatprep.subr.mxu0 0.0
    %1080 = vmatpush1.msra.mxu0 0.0
    %1081 = vmatprep.subr.mxu0 0.0
    %1082 = vmatpush1.msra.mxu0 0.0
    %1083 = vmatprep.subr.mxu0 0.0
    %1084 = vmatpush1.msra.mxu0 0.0
    %1085 = vmatprep.subr.mxu0 0.0
    %1086 = vmatpush1.msra.mxu0 0.0
    %1087 = vmatprep.subr.mxu0 0.0
    %1088 = vmatpush1.msra.mxu0 0.0
    %1089 = vmatprep.subr.mxu0 0.0
    %1090 = vmatpush1.msra.mxu0 %v1051
    %1091 = vmatprep.subr.mxu0 0.0
    %1092 = vmatpush2.msra.mxu0 0.0
    %1093 = vmatprep.subr.mxu0 0.0
    %1094 = vmatpush2.msra.mxu0 0.0
    %1095 = vmatprep.subr.mxu0 0.0
    %1096 = vmatpush2.msra.mxu0 0.0
    %1097 = vmatprep.subr.mxu0 0.0
    %1098 = vmatpush2.msra.mxu0 0.0
    %1099 = vmatprep.subr.mxu0 0.0
    %1100 = vmatpush2.msra.mxu0 0.0
    %1101 = vmatprep.subr.mxu0 0.0
    %1102 = vmatpush2.msra.mxu0 0.0
    %1103 = vmatprep.subr.mxu0 0.0
    %1104 = vmatpush2.msra.mxu0 0.0
    %1105 = vmatprep.subr.mxu0 0.0
    %1106 = vmatpush2.msra.mxu0 0.0
    %1107 = vmatprep.subr.mxu0 0.0
    %1108 = vmatpush2.msra.mxu0 0.0
    %1109 = vmatprep.subr.mxu0 0.0
    %1110 = vmatpush2.msra.mxu0 0.0
    %1111 = vmatprep.subr.mxu0 0.0
    %1112 = vmatpush2.msra.mxu0 0.0
    %1113 = vmatprep.subr.mxu0 0.0
    %1114 = vmatpush2.msra.mxu0 0.0
    %1115 = vmatprep.subr.mxu0 0.0
    %1116 = vmatpush2.msra.mxu0 0.0
    %1117 = vmatprep.subr.mxu0 0.0
    %1118 = vmatpush2.msra.mxu0 0.0
    %1119 = vmatprep.subr.mxu0 0.0
    %1120 = vmatpush2.msra.mxu0 0.0
    %1121 = vmatprep.subr.mxu0 0.0
    %1122 = vmatpush2.msra.mxu0 0.0
    %1123 = vmatprep.mubr.f32.mxu0 0.0
    %1124 = vmatmul.mubr.f32.gmra.mxu0 %v1054
    %v1125 = vpop.f32.mrf.mxu0
    %v1126 = vadd.f32 0.0, %v1125
    %v1127 = vpop.f32.mrf.mxu0
    %1128 = vmatprep.mubr.f32.mxu0 0.0
    %1129 = vmatmul.mubr.f32.gmra.mxu0 %v1057
    %v1130 = vpop.f32.mrf.mxu0
    %v1131 = vadd.f32 0.0, %v1130
    %v1132 = vpop.f32.mrf.mxu0
    %1133 = vdwg.mxu0
    %v1134 = vld [vmem:[#allocation16 + $0x10] sm:$0xff]
    %v1135 = vld [vmem:[#allocation16 + $0x18] sm:$0xff]
    %v1137 = vsel %vm357, %v1126, 0
    %v1140 = vsel %vm357, %v1131, 0
    %1142 = vmatprep.subr.mxu0 0.0
    %1143 = vmatpush1.msra.mxu0 0.0
    %1144 = vmatprep.subr.mxu0 0.0
    %1145 = vmatpush1.msra.mxu0 0.0
    %1146 = vmatprep.subr.mxu0 0.0
    %1147 = vmatpush1.msra.mxu0 0.0
    %1148 = vmatprep.subr.mxu0 0.0
    %1149 = vmatpush1.msra.mxu0 0.0
    %1150 = vmatprep.subr.mxu0 0.0
    %1151 = vmatpush1.msra.mxu0 0.0
    %1152 = vmatprep.subr.mxu0 0.0
    %1153 = vmatpush1.msra.mxu0 0.0
    %1154 = vmatprep.subr.mxu0 0.0
    %1155 = vmatpush1.msra.mxu0 0.0
    %1156 = vmatprep.subr.mxu0 0.0
    %1157 = vmatpush1.msra.mxu0 0.0
    %1158 = vmatprep.subr.mxu0 0.0
    %1159 = vmatpush1.msra.mxu0 0.0
    %1160 = vmatprep.subr.mxu0 0.0
    %1161 = vmatpush1.msra.mxu0 0.0
    %1162 = vmatprep.subr.mxu0 0.0
    %1163 = vmatpush1.msra.mxu0 0.0
    %1164 = vmatprep.subr.mxu0 0.0
    %1165 = vmatpush1.msra.mxu0 0.0
    %1166 = vmatprep.subr.mxu0 0.0
    %1167 = vmatpush1.msra.mxu0 0.0
    %1168 = vmatprep.subr.mxu0 0.0
    %1169 = vmatpush1.msra.mxu0 0.0
    %1170 = vmatprep.subr.mxu0 0.0
    %1171 = vmatpush1.msra.mxu0 %v1135
    %1172 = vmatprep.subr.mxu0 0.0
    %1173 = vmatpush1.msra.mxu0 %v1134
    %1174 = vmatprep.subr.mxu0 0.0
    %1175 = vmatpush2.msra.mxu0 0.0
    %1176 = vmatprep.subr.mxu0 0.0
    %1177 = vmatpush2.msra.mxu0 0.0
    %1178 = vmatprep.subr.mxu0 0.0
    %1179 = vmatpush2.msra.mxu0 0.0
    %1180 = vmatprep.subr.mxu0 0.0
    %1181 = vmatpush2.msra.mxu0 0.0
    %1182 = vmatprep.subr.mxu0 0.0
    %1183 = vmatpush2.msra.mxu0 0.0
    %1184 = vmatprep.subr.mxu0 0.0
    %1185 = vmatpush2.msra.mxu0 0.0
    %1186 = vmatprep.subr.mxu0 0.0
    %1187 = vmatpush2.msra.mxu0 0.0
    %1188 = vmatprep.subr.mxu0 0.0
    %1189 = vmatpush2.msra.mxu0 0.0
    %1190 = vmatprep.subr.mxu0 0.0
    %1191 = vmatpush2.msra.mxu0 0.0
    %1192 = vmatprep.subr.mxu0 0.0
    %1193 = vmatpush2.msra.mxu0 0.0
    %1194 = vmatprep.subr.mxu0 0.0
    %1195 = vmatpush2.msra.mxu0 0.0
    %1196 = vmatprep.subr.mxu0 0.0
    %1197 = vmatpush2.msra.mxu0 0.0
    %1198 = vmatprep.subr.mxu0 0.0
    %1199 = vmatpush2.msra.mxu0 0.0
    %1200 = vmatprep.subr.mxu0 0.0
    %1201 = vmatpush2.msra.mxu0 0.0
    %1202 = vmatprep.subr.mxu0 0.0
    %1203 = vmatpush2.msra.mxu0 0.0
    %1204 = vmatprep.subr.mxu0 0.0
    %1205 = vmatpush2.msra.mxu0 0.0
    %1206 = vmatprep.mubr.f32.mxu0 0.0
    %1207 = vmatmul.mubr.f32.gmra.mxu0 %v1137
    %v1208 = vpop.f32.mrf.mxu0
    %v1209 = vadd.f32 0.0, %v1208
    %v1210 = vpop.f32.mrf.mxu0
    %1211 = vmatprep.mubr.f32.mxu0 0.0
    %1212 = vmatmul.mubr.f32.gmra.mxu0 %v1140
    %v1213 = vpop.f32.mrf.mxu0
    %v1214 = vadd.f32 0.0, %v1213
    %v1215 = vpop.f32.mrf.mxu0
    %1216 = vdwg.mxu0
    %v1218 = vsel %vm357, %v926, 0
    %v1221 = vsel %vm357, %v931, 0
    %1223 = vmatprep.subr.mxu0 0.0
    %1224 = vmatpush1.msra.mxu0 0.0
    %1225 = vmatprep.subr.mxu0 0.0
    %1226 = vmatpush1.msra.mxu0 0.0
    %1227 = vmatprep.subr.mxu0 0.0
    %1228 = vmatpush1.msra.mxu0 0.0
    %1229 = vmatprep.subr.mxu0 0.0
    %1230 = vmatpush1.msra.mxu0 0.0
    %1231 = vmatprep.subr.mxu0 0.0
    %1232 = vmatpush1.msra.mxu0 0.0
    %1233 = vmatprep.subr.mxu0 0.0
    %1234 = vmatpush1.msra.mxu0 0.0
    %1235 = vmatprep.subr.mxu0 0.0
    %1236 = vmatpush1.msra.mxu0 0.0
    %1237 = vmatprep.subr.mxu0 0.0
    %1238 = vmatpush1.msra.mxu0 0.0
    %1239 = vmatprep.subr.mxu0 0.0
    %1240 = vmatpush1.msra.mxu0 0.0
    %1241 = vmatprep.subr.mxu0 0.0
    %1242 = vmatpush1.msra.mxu0 0.0
    %1243 = vmatprep.subr.mxu0 0.0
    %1244 = vmatpush1.msra.mxu0 0.0
    %1245 = vmatprep.subr.mxu0 0.0
    %1246 = vmatpush1.msra.mxu0 0.0
    %1247 = vmatprep.subr.mxu0 0.0
    %1248 = vmatpush1.msra.mxu0 0.0
    %1249 = vmatprep.subr.mxu0 0.0
    %1250 = vmatpush1.msra.mxu0 0.0
    %1251 = vmatprep.subr.mxu0 0.0
    %1252 = vmatpush1.msra.mxu0 %v935
    %1253 = vmatprep.subr.mxu0 0.0
    %1254 = vmatpush1.msra.mxu0 %v934
    %1255 = vmatprep.subr.mxu0 0.0
    %1256 = vmatpush2.msra.mxu0 0.0
    %1257 = vmatprep.subr.mxu0 0.0
    %1258 = vmatpush2.msra.mxu0 0.0
    %1259 = vmatprep.subr.mxu0 0.0
    %1260 = vmatpush2.msra.mxu0 0.0
    %1261 = vmatprep.subr.mxu0 0.0
    %1262 = vmatpush2.msra.mxu0 0.0
    %1263 = vmatprep.subr.mxu0 0.0
    %1264 = vmatpush2.msra.mxu0 0.0
    %1265 = vmatprep.subr.mxu0 0.0
    %1266 = vmatpush2.msra.mxu0 0.0
    %1267 = vmatprep.subr.mxu0 0.0
    %1268 = vmatpush2.msra.mxu0 0.0
    %1269 = vmatprep.subr.mxu0 0.0
    %1270 = vmatpush2.msra.mxu0 0.0
    %1271 = vmatprep.subr.mxu0 0.0
    %1272 = vmatpush2.msra.mxu0 0.0
    %1273 = vmatprep.subr.mxu0 0.0
    %1274 = vmatpush2.msra.mxu0 0.0
    %1275 = vmatprep.subr.mxu0 0.0
    %1276 = vmatpush2.msra.mxu0 0.0
    %1277 = vmatprep.subr.mxu0 0.0
    %1278 = vmatpush2.msra.mxu0 0.0
    %1279 = vmatprep.subr.mxu0 0.0
    %1280 = vmatpush2.msra.mxu0 0.0
    %1281 = vmatprep.subr.mxu0 0.0
    %1282 = vmatpush2.msra.mxu0 0.0
    %1283 = vmatprep.subr.mxu0 0.0
    %1284 = vmatpush2.msra.mxu0 0.0
    %1285 = vmatprep.subr.mxu0 0.0
    %1286 = vmatpush2.msra.mxu0 0.0
    %1287 = vmatprep.mubr.f32.mxu0 0.0
    %1288 = vmatmul.mubr.f32.gmra.mxu0 %v1218
    %v1289 = vpop.f32.mrf.mxu0
    %v1290 = vadd.f32 %v1209, %v1289
    %v1291 = vpop.f32.mrf.mxu0
    %1292 = vmatprep.mubr.f32.mxu0 0.0
    %1293 = vmatmul.mubr.f32.gmra.mxu0 %v1221
    %v1294 = vpop.f32.mrf.mxu0
    %v1295 = vadd.f32 %v1214, %v1294
    %v1296 = vpop.f32.mrf.mxu0
    %1297 = vdwg.mxu0
    %1298 = vst.msk [vmem:[#allocation17] sm:$0xff] %vm182, %v1290
    %1299 = vst.msk [vmem:[#allocation17 + $0x8] sm:$0xff] %vm182, %v1295
    // Predicated region
    $region90: #{tpu_custom_call.1} parent=1 // pred_check
      _
    $region91: #{tpu_custom_call.1} parent=1 // pred_check_branch
      %1301 = sbr.rel (0) target = $region93
    $region92: #{tpu_custom_call.1} parent=1 // pred_region
      %s1303 = ssub.s32 256, 256
      %1304 = vsyncadd [#allocation4], %s1303
      %s1305 = sshll.u32 [#allocation17], 4
      %s1306 = int_to_ptr.vmem [resolvable:$true] %s1305
      %1311 = dma.vmem_to_hbm [thread:$0]  %s1306, 256, %s13, [#allocation4], 128, 128, 8
    $region93: #{tpu_custom_call.1} parent=1 // pred_fallthru
      _
    // Predicated region
    $region94: #{tpu_custom_call.1} parent=1 // pred_check
      _
    $region95: #{tpu_custom_call.1} parent=1 // pred_check_branch
      %1313 = sbr.rel (0) target = $region97
    $region96: #{tpu_custom_call.1} parent=1 // pred_region
      %1314 = dma.done [#allocation4], 256
    $region97: #{tpu_custom_call.1} parent=1 // pred_fallthru
      _
    %1315 = vsyncpa [#allocation3], 1
    %1316 = vsyncpa [#allocation6], 1
    %1317 = vsyncpa [#allocation9], 1
    %1318 = vsyncpa [#allocation12], 1
    %1319 = vsyncpa [#allocation15], 1
    %1320 = vsyncpa [#allocation4], 1

</llo_original>
